<compile_context>
chip_gen: v6e
topology: v6e:2x2x1
jax: 0.10.0
libtpu: 0.0.40
codegen_flags: <defaults>
</compile_context>

<pallas_src>
import functools

import jax
import jax.numpy as jnp
import numpy as np
from jax.experimental import pallas as pl
from jax.experimental.pallas import tpu as pltpu


def _round_up(x, m):
    return (x + m - 1) // m * m


def _choose_time_block(T, TB, H, budget_bytes=8 * 1024 * 1024, cap=32):
    """Largest TT dividing T with the double-buffered (TT,TB,6H) input slab
    plus (TT,TB,H) output slab under a VMEM budget."""
    per_step = 2 * TB * (6 * H + H) * 4  # double-buffered, f32
    max_tt = max(1, min(T, cap, budget_bytes // max(per_step, 1)))
    for tt in range(int(max_tt), 0, -1):
        if T % tt == 0:
            return tt
    return 1


def _recurrent_kernel(pi_ref, wh_ref, out_ref, hN_ref, cN_ref, h_scr, c_scr,
                      *, go_forward: bool, time_block: int, hidden: int):
    """One time-block of an AugmentedLstm (highway) layer.

    pi_ref : (TT, TB, 6H) f32   precomputed x@Wx + bx + [bh, 0]  for this block
    wh_ref : (H, 5H)      bf16  recurrent weights (resident)
    out_ref: (TT, TB, H)  f32   per-timestep outputs for this block
    hN/cN  : (TB, H)      f32   final hidden / cell state (written on last block)
    h/c_scr: (TB, H)      f32   recurrent state carried across time blocks
    """
    ti = pl.program_id(1)
    H = hidden
    TT = time_block

    @pl.when(ti == 0)
    def _():
        h_scr[...] = jnp.zeros_like(h_scr)
        c_scr[...] = jnp.zeros_like(c_scr)

    h = h_scr[...]
    c = c_scr[...]
    wh = wh_ref[...]  # (H, 5H) bf16, hoisted out of the unrolled loop

    for li in range(TT):
        # Intra-block order: forward layers walk 0..TT-1, backward layers
        # walk TT-1..0 (inter-block order is handled by the index_map).
        i = li if go_forward else TT - 1 - li
        pi = pi_ref[i]  # (TB, 6H) f32, static index

        # Recurrent projection only — the input projection was hoisted.
        ps = jnp.dot(h.astype(jnp.bfloat16), wh,
                     preferred_element_type=jnp.float32)  # (TB, 5H) f32

        input_gate = jax.nn.sigmoid(pi[:, 0 * H:1 * H] + ps[:, 0 * H:1 * H])
        forget_gate = jax.nn.sigmoid(pi[:, 1 * H:2 * H] + ps[:, 1 * H:2 * H])
        memory_init = jnp.tanh(pi[:, 2 * H:3 * H] + ps[:, 2 * H:3 * H])
        output_gate = jax.nn.sigmoid(pi[:, 3 * H:4 * H] + ps[:, 3 * H:4 * H])

        c = input_gate * memory_init + forget_gate * c
        timestep_output = output_gate * jnp.tanh(c)

        highway_gate = jax.nn.sigmoid(pi[:, 4 * H:5 * H] + ps[:, 4 * H:5 * H])
        highway_input_projection = pi[:, 5 * H:6 * H]
        h = (highway_gate * timestep_output
             + (1.0 - highway_gate) * highway_input_projection)

        out_ref[i] = h

    h_scr[...] = h
    c_scr[...] = c

    @pl.when(ti == pl.num_programs(1) - 1)
    def _():
        hN_ref[...] = h
        cN_ref[...] = c


def _run_layer(pi_all, wh_bf16, *, go_forward: bool, hidden_size: int):
    """Run the recurrent part of one layer. pi_all: (T, Bp, 6H) f32."""
    T, Bp, _ = pi_all.shape
    H = hidden_size

    # Batch tiling (one tile at demo sizes; >1 tiles shard across v7x cores).
    TB = 128 if (Bp % 128 == 0) else Bp
    n_b = Bp // TB
    TT = _choose_time_block(T, TB, H)
    n_t = T // TT

    if go_forward:
        t_map = lambda bi, ti: (ti, bi, 0)
    else:
        t_map = lambda bi, ti: (n_t - 1 - ti, bi, 0)

    kernel = functools.partial(_recurrent_kernel, go_forward=go_forward,
                               time_block=TT, hidden=H)

    grid_spec = pltpu.PrefetchScalarGridSpec(
        num_scalar_prefetch=0,
        grid=(n_b, n_t),
        in_specs=[
            pl.BlockSpec((TT, TB, 6 * H), t_map),            # projected inputs
            pl.BlockSpec((H, 5 * H), lambda bi, ti: (0, 0)),  # Wh (resident)
        ],
        out_specs=[
            pl.BlockSpec((TT, TB, H), t_map),                 # output sequence
            pl.BlockSpec((TB, H), lambda bi, ti: (bi, 0)),    # final hidden
            pl.BlockSpec((TB, H), lambda bi, ti: (bi, 0)),    # final cell
        ],
        scratch_shapes=[
            pltpu.VMEM((TB, H), jnp.float32),   # h state
            pltpu.VMEM((TB, H), jnp.float32),   # c state
        ],
    )

    out, h_final, c_final = pl.pallas_call(
        kernel,
        grid_spec=grid_spec,
        out_shape=(
            jax.ShapeDtypeStruct((T, Bp, H), jnp.float32),
            jax.ShapeDtypeStruct((Bp, H), jnp.float32),
            jax.ShapeDtypeStruct((Bp, H), jnp.float32),
        ),
        compiler_params=pltpu.CompilerParams(
            dimension_semantics=("parallel", "arbitrary"),
            vmem_limit_bytes=64 * 1024 * 1024,
        ),
    )(pi_all, wh_bf16)
    return out, h_final, c_final


def init_stacked_alternating_lstm_params(key, input_size, hidden_size, num_layers):
    """Deterministic synthetic parameters. Shapes match the torch module:
    per layer: Wx (6H, D_in) -> stored transposed (D_in, 6H); bx (1, 6H);
               Wh (5H, H)    -> stored transposed (H, 5H);    bh (1, 5H)."""
    params = []
    d_in = input_size
    for _ in range(num_layers):
        k1, k2, k3, k4, key = jax.random.split(key, 5)
        scale_x = 1.0 / np.sqrt(d_in)
        scale_h = 1.0 / np.sqrt(hidden_size)
        wx = jax.random.uniform(k1, (d_in, 6 * hidden_size), jnp.float32,
                                -scale_x, scale_x)
        bx = jax.random.uniform(k2, (1, 6 * hidden_size), jnp.float32,
                                -scale_x, scale_x)
        wh = jax.random.uniform(k3, (hidden_size, 5 * hidden_size), jnp.float32,
                                -scale_h, scale_h)
        bh = jax.random.uniform(k4, (1, 5 * hidden_size), jnp.float32,
                                -scale_h, scale_h)
        params.append((wx, bx, wh, bh))
        d_in = hidden_size
    return params


def stacked_alternating_lstm_forward(x_btd, params):
    """x_btd: (B, T, D) batch-first dense input (full-length sequences).
    Returns (output (B, T, H), (final_h (L, B, H), final_c (L, B, H)))."""
    x = x_btd.astype(jnp.float32)
    B, T, D = x.shape

    # Pad batch to a multiple of 8 sublanes (unmasked f32 stores); padded rows
    # are sliced away at the end.
    Bp = _round_up(B, 8)
    if Bp != B:
        x = jnp.pad(x, ((0, Bp - B), (0, 0), (0, 0)))

    seq = jnp.transpose(x, (1, 0, 2))  # time-major (T, Bp, D)

    final_hs, final_cs = [], []
    for layer_idx, (wx, bx, wh, bh) in enumerate(params):
        H = wh.shape[0]
        go_forward = (layer_idx % 2 == 0)

        # Hoisted, time-independent input projection: one big MXU matmul with
        # bf16 operands / f32 accumulation; combined bias bx + [bh, 0_H] folded
        # in so the per-step kernel does no bias adds.
        b_comb = bx + jnp.concatenate(
            [bh, jnp.zeros((1, H), jnp.float32)], axis=1)           # (1, 6H)
        x2d = seq.reshape(T * Bp, seq.shape[-1]).astype(jnp.bfloat16)
        pi_all = jnp.dot(x2d, wx.astype(jnp.bfloat16),
                         preferred_element_type=jnp.float32)
        pi_all = pi_all.reshape(T, Bp, 6 * H) + b_comb              # (T, Bp, 6H)

        seq, h_f, c_f = _run_layer(pi_all, wh.astype(jnp.bfloat16),
                                   go_forward=go_forward, hidden_size=H)
        final_hs.append(h_f[:B])
        final_cs.append(c_f[:B])

    output = jnp.transpose(seq, (1, 0, 2))[:B]        # back to batch-first
    final_h = jnp.stack(final_hs, axis=0)             # (L, B, H)
    final_c = jnp.stack(final_cs, axis=0)
    return output, (final_h, final_c)


# ---------------- pure-JAX reference (for correctness check) ----------------
# Mirrors the kernel's mixed-precision scheme (bf16 MXU operands, f32
# accumulation, f32 gate math) so only accumulation-order differences remain.

def _ref_layer(x_btd, wx, bx, wh, bh, go_forward):
    B, T, D = x_btd.shape
    H = wh.shape[0]
    wx_b = wx.astype(jnp.bfloat16)
    wh_b = wh.astype(jnp.bfloat16)

    def step(carry, x_t):
        h, c = carry
        pi = jnp.dot(x_t.astype(jnp.bfloat16), wx_b,
                     preferred_element_type=jnp.float32) + bx[0]
        ps = jnp.dot(h.astype(jnp.bfloat16), wh_b,
                     preferred_element_type=jnp.float32) + bh[0]
        ig = jax.nn.sigmoid(pi[:, 0 * H:1 * H] + ps[:, 0 * H:1 * H])
        fg = jax.nn.sigmoid(pi[:, 1 * H:2 * H] + ps[:, 1 * H:2 * H])
        mi = jnp.tanh(pi[:, 2 * H:3 * H] + ps[:, 2 * H:3 * H])
        og = jax.nn.sigmoid(pi[:, 3 * H:4 * H] + ps[:, 3 * H:4 * H])
        c_new = ig * mi + fg * c
        out = og * jnp.tanh(c_new)
        hg = jax.nn.sigmoid(pi[:, 4 * H:5 * H] + ps[:, 4 * H:5 * H])
        out = hg * out + (1.0 - hg) * pi[:, 5 * H:6 * H]
        return (out, c_new), out

    xs = jnp.transpose(x_btd, (1, 0, 2))
    if not go_forward:
        xs = xs[::-1]
    init = (jnp.zeros((B, H), jnp.float32), jnp.zeros((B, H), jnp.float32))
    (h_f, c_f), outs = jax.lax.scan(step, init, xs)
    if not go_forward:
        outs = outs[::-1]
    return jnp.transpose(outs, (1, 0, 2)), h_f, c_f


def _ref_forward(x_btd, params):
    seq = x_btd.astype(jnp.float32)
    hs, cs = [], []
    for i, (wx, bx, wh, bh) in enumerate(params):
        seq, h_f, c_f = _ref_layer(seq, wx, bx, wh, bh, i % 2 == 0)
        hs.append(h_f)
        cs.append(c_f)
    return seq, (jnp.stack(hs, 0), jnp.stack(cs, 0))


if __name__ == "__main__":
    batch, seq_len, input_size, hidden_size, num_layers = 2, 8, 16, 32, 3

    key = jax.random.PRNGKey(0)
    k_x, k_p = jax.random.split(key)
    x = jax.random.normal(k_x, (batch, seq_len, input_size), jnp.float32)
    params = init_stacked_alternating_lstm_params(
        k_p, input_size, hidden_size, num_layers)

    out, (final_h, final_c) = stacked_alternating_lstm_forward(x, params)
    jax.block_until_ready((out, final_h, final_c))

    # Correctness check against the precision-matched pure-JAX reference.
    ref_out, (ref_h, ref_c) = _ref_forward(x, params)
    np.testing.assert_allclose(np.asarray(out), np.asarray(ref_out),
                               rtol=5e-3, atol=5e-3)
    np.testing.assert_allclose(np.asarray(final_h), np.asarray(ref_h),
                               rtol=5e-3, atol=5e-3)
    np.testing.assert_allclose(np.asarray(final_c), np.asarray(ref_c),
                               rtol=5e-3, atol=5e-3)

    assert out.shape == (batch, seq_len, hidden_size)
    assert final_h.shape == (num_layers, batch, hidden_size)
    assert final_c.shape == (num_layers, batch, hidden_size)
    print("KERNEL_OK")
</pallas_src>

<mosaic_0001>
module attributes {stable_mosaic.version = 11 : i64} {
  func.func @_recurrent_kernel(%arg0: i32, %arg1: i32, %arg2: memref<8x8x192xf32, #tpu.memory_space<vmem>>, %arg3: memref<32x160xbf16, #tpu.memory_space<vmem>>, %arg4: memref<8x8x32xf32, #tpu.memory_space<vmem>>, %arg5: memref<8x32xf32, #tpu.memory_space<vmem>>, %arg6: memref<8x32xf32, #tpu.memory_space<vmem>>, %arg7: memref<8x32xf32, #tpu.memory_space<vmem>>, %arg8: memref<8x32xf32, #tpu.memory_space<vmem>>) attributes {dimension_semantics = [#tpu.dimension_semantics<parallel>, #tpu.dimension_semantics<arbitrary>], iteration_bounds = array<i64: 1, 1>, scalar_prefetch = 0 : i64, scratch_operands = 2 : i64, tpu.core_type = #tpu.core_type<tc>, window_params = [{transform_indices = @transform_0, window_bounds = array<i64: 8, 8, 192>}, {pipeline_mode = #tpu.pipeline_mode<synchronous>, transform_indices = @transform_1, window_bounds = array<i64: 32, 160>}, {transform_indices = @transform_2, window_bounds = array<i64: 8, 8, 32>}, {transform_indices = @transform_3, window_bounds = array<i64: 8, 32>}, {transform_indices = @transform_4, window_bounds = array<i64: 8, 32>}]} {
    %c0_i32 = arith.constant 0 : i32
    %0 = arith.cmpi eq, %arg1, %c0_i32 : i32
    %1 = arith.extui %0 : i1 to i32
    %c0_i32_0 = arith.constant 0 : i32
    %2 = arith.cmpi ne, %1, %c0_i32_0 : i32
    scf.if %2 {
      %cst_100 = arith.constant 0.000000e+00 : f32
      %443 = vector.broadcast %cst_100 : f32 to vector<8x32xf32>
      %c0_101 = arith.constant 0 : index
      %c0_102 = arith.constant 0 : index
      %444 = vector.load %arg7[%c0_101, %c0_102] : memref<8x32xf32, #tpu.memory_space<vmem>>, vector<8x32xf32>
      tpu.vector_store %arg7[%c0_101, %c0_102], %443 {strides = array<i32>} : memref<8x32xf32, #tpu.memory_space<vmem>>, vector<8x32xf32>,
      %cst_103 = arith.constant 0.000000e+00 : f32
      %445 = vector.broadcast %cst_103 : f32 to vector<8x32xf32>
      %c0_104 = arith.constant 0 : index
      %c0_105 = arith.constant 0 : index
      %446 = vector.load %arg8[%c0_104, %c0_105] : memref<8x32xf32, #tpu.memory_space<vmem>>, vector<8x32xf32>
      tpu.vector_store %arg8[%c0_104, %c0_105], %445 {strides = array<i32>} : memref<8x32xf32, #tpu.memory_space<vmem>>, vector<8x32xf32>,
    } else {
    }
    %c0 = arith.constant 0 : index
    %c0_1 = arith.constant 0 : index
    %3 = vector.load %arg7[%c0, %c0_1] : memref<8x32xf32, #tpu.memory_space<vmem>>, vector<8x32xf32>
    %c0_2 = arith.constant 0 : index
    %c0_3 = arith.constant 0 : index
    %4 = vector.load %arg8[%c0_2, %c0_3] : memref<8x32xf32, #tpu.memory_space<vmem>>, vector<8x32xf32>
    %c0_4 = arith.constant 0 : index
    %c0_5 = arith.constant 0 : index
    %5 = vector.load %arg3[%c0_4, %c0_5] : memref<32x160xbf16, #tpu.memory_space<vmem>>, vector<32x160xbf16>
    %c0_6 = arith.constant 0 : index
    %c0_7 = arith.constant 0 : index
    %c0_8 = arith.constant 0 : index
    %6 = vector.load %arg2[%c0_6, %c0_7, %c0_8] : memref<8x8x192xf32, #tpu.memory_space<vmem>>, vector<1x8x192xf32>
    %7 = vector.shape_cast %6 : vector<1x8x192xf32> to vector<8x192xf32>
    %8 = arith.truncf %3 : vector<8x32xf32> to vector<8x32xbf16>
    %cst = arith.constant dense<0.000000e+00> : vector<8x160xf32>
    %9 = tpu.matmul %8, %5, %cst {dimension_numbers = #tpu.dot_dimension_numbers<[1], [0], [0], [1], [0, 0, 1, 1], [], []>} : vector<8x32xbf16>, vector<32x160xbf16>, vector<8x160xf32> -> vector<8x160xf32>
    %10 = vector.extract_strided_slice %7 {offsets = [0, 0], sizes = [8, 32], strides = [1, 1]} : vector<8x192xf32> to vector<8x32xf32>
    %11 = vector.extract_strided_slice %9 {offsets = [0, 0], sizes = [8, 32], strides = [1, 1]} : vector<8x160xf32> to vector<8x32xf32>
    %12 = arith.addf %10, %11 : vector<8x32xf32>
    %13 = arith.negf %12 : vector<8x32xf32>
    %14 = math.exp %13 : vector<8x32xf32>
    %cst_9 = arith.constant 1.000000e+00 : f32
    %15 = vector.broadcast %cst_9 : f32 to vector<8x32xf32>
    %16 = arith.addf %15, %14 : vector<8x32xf32>
    %17 = arith.divf %15, %16 : vector<8x32xf32>
    %18 = vector.extract_strided_slice %7 {offsets = [0, 32], sizes = [8, 32], strides = [1, 1]} : vector<8x192xf32> to vector<8x32xf32>
    %19 = vector.extract_strided_slice %9 {offsets = [0, 32], sizes = [8, 32], strides = [1, 1]} : vector<8x160xf32> to vector<8x32xf32>
    %20 = arith.addf %18, %19 : vector<8x32xf32>
    %21 = arith.negf %20 : vector<8x32xf32>
    %22 = math.exp %21 : vector<8x32xf32>
    %cst_10 = arith.constant 1.000000e+00 : f32
    %23 = vector.broadcast %cst_10 : f32 to vector<8x32xf32>
    %24 = arith.addf %23, %22 : vector<8x32xf32>
    %25 = arith.divf %23, %24 : vector<8x32xf32>
    %26 = vector.extract_strided_slice %7 {offsets = [0, 64], sizes = [8, 32], strides = [1, 1]} : vector<8x192xf32> to vector<8x32xf32>
    %27 = vector.extract_strided_slice %9 {offsets = [0, 64], sizes = [8, 32], strides = [1, 1]} : vector<8x160xf32> to vector<8x32xf32>
    %28 = arith.addf %26, %27 : vector<8x32xf32>
    %29 = math.tanh %28 : vector<8x32xf32>
    %30 = vector.extract_strided_slice %7 {offsets = [0, 96], sizes = [8, 32], strides = [1, 1]} : vector<8x192xf32> to vector<8x32xf32>
    %31 = vector.extract_strided_slice %9 {offsets = [0, 96], sizes = [8, 32], strides = [1, 1]} : vector<8x160xf32> to vector<8x32xf32>
    %32 = arith.addf %30, %31 : vector<8x32xf32>
    %33 = arith.negf %32 : vector<8x32xf32>
    %34 = math.exp %33 : vector<8x32xf32>
    %cst_11 = arith.constant 1.000000e+00 : f32
    %35 = vector.broadcast %cst_11 : f32 to vector<8x32xf32>
    %36 = arith.addf %35, %34 : vector<8x32xf32>
    %37 = arith.divf %35, %36 : vector<8x32xf32>
    %38 = arith.mulf %17, %29 : vector<8x32xf32>
    %39 = arith.mulf %25, %4 : vector<8x32xf32>
    %40 = arith.addf %38, %39 : vector<8x32xf32>
    %41 = math.tanh %40 : vector<8x32xf32>
    %42 = arith.mulf %37, %41 : vector<8x32xf32>
    %43 = vector.extract_strided_slice %7 {offsets = [0, 128], sizes = [8, 32], strides = [1, 1]} : vector<8x192xf32> to vector<8x32xf32>
    %44 = vector.extract_strided_slice %9 {offsets = [0, 128], sizes = [8, 32], strides = [1, 1]} : vector<8x160xf32> to vector<8x32xf32>
    %45 = arith.addf %43, %44 : vector<8x32xf32>
    %46 = arith.negf %45 : vector<8x32xf32>
    %47 = math.exp %46 : vector<8x32xf32>
    %cst_12 = arith.constant 1.000000e+00 : f32
    %48 = vector.broadcast %cst_12 : f32 to vector<8x32xf32>
    %49 = arith.addf %48, %47 : vector<8x32xf32>
    %50 = arith.divf %48, %49 : vector<8x32xf32>
    %51 = vector.extract_strided_slice %7 {offsets = [0, 160], sizes = [8, 32], strides = [1, 1]} : vector<8x192xf32> to vector<8x32xf32>
    %52 = arith.mulf %50, %42 : vector<8x32xf32>
    %cst_13 = arith.constant 1.000000e+00 : f32
    %53 = vector.broadcast %cst_13 : f32 to vector<8x32xf32>
    %54 = arith.subf %53, %50 : vector<8x32xf32>
    %55 = arith.mulf %54, %51 : vector<8x32xf32>
    %56 = arith.addf %52, %55 : vector<8x32xf32>
    %c0_14 = arith.constant 0 : index
    %c0_15 = arith.constant 0 : index
    %c0_16 = arith.constant 0 : index
    %57 = vector.load %arg4[%c0_14, %c0_15, %c0_16] : memref<8x8x32xf32, #tpu.memory_space<vmem>>, vector<1x8x32xf32>
    %58 = vector.shape_cast %57 : vector<1x8x32xf32> to vector<8x32xf32>
    %59 = vector.shape_cast %56 : vector<8x32xf32> to vector<1x8x32xf32>
    tpu.vector_store %arg4[%c0_14, %c0_15, %c0_16], %59 {strides = array<i32>} : memref<8x8x32xf32, #tpu.memory_space<vmem>>, vector<1x8x32xf32>,
    %c1 = arith.constant 1 : index
    %c0_17 = arith.constant 0 : index
    %c0_18 = arith.constant 0 : index
    %60 = vector.load %arg2[%c1, %c0_17, %c0_18] : memref<8x8x192xf32, #tpu.memory_space<vmem>>, vector<1x8x192xf32>
    %61 = vector.shape_cast %60 : vector<1x8x192xf32> to vector<8x192xf32>
    %62 = arith.truncf %56 : vector<8x32xf32> to vector<8x32xbf16>
    %cst_19 = arith.constant dense<0.000000e+00> : vector<8x160xf32>
    %63 = tpu.matmul %62, %5, %cst_19 {dimension_numbers = #tpu.dot_dimension_numbers<[1], [0], [0], [1], [0, 0, 1, 1], [], []>} : vector<8x32xbf16>, vector<32x160xbf16>, vector<8x160xf32> -> vector<8x160xf32>
    %64 = vector.extract_strided_slice %61 {offsets = [0, 0], sizes = [8, 32], strides = [1, 1]} : vector<8x192xf32> to vector<8x32xf32>
    %65 = vector.extract_strided_slice %63 {offsets = [0, 0], sizes = [8, 32], strides = [1, 1]} : vector<8x160xf32> to vector<8x32xf32>
    %66 = arith.addf %64, %65 : vector<8x32xf32>
    %67 = arith.negf %66 : vector<8x32xf32>
    %68 = math.exp %67 : vector<8x32xf32>
    %cst_20 = arith.constant 1.000000e+00 : f32
    %69 = vector.broadcast %cst_20 : f32 to vector<8x32xf32>
    %70 = arith.addf %69, %68 : vector<8x32xf32>
    %71 = arith.divf %69, %70 : vector<8x32xf32>
    %72 = vector.extract_strided_slice %61 {offsets = [0, 32], sizes = [8, 32], strides = [1, 1]} : vector<8x192xf32> to vector<8x32xf32>
    %73 = vector.extract_strided_slice %63 {offsets = [0, 32], sizes = [8, 32], strides = [1, 1]} : vector<8x160xf32> to vector<8x32xf32>
    %74 = arith.addf %72, %73 : vector<8x32xf32>
    %75 = arith.negf %74 : vector<8x32xf32>
    %76 = math.exp %75 : vector<8x32xf32>
    %cst_21 = arith.constant 1.000000e+00 : f32
    %77 = vector.broadcast %cst_21 : f32 to vector<8x32xf32>
    %78 = arith.addf %77, %76 : vector<8x32xf32>
    %79 = arith.divf %77, %78 : vector<8x32xf32>
    %80 = vector.extract_strided_slice %61 {offsets = [0, 64], sizes = [8, 32], strides = [1, 1]} : vector<8x192xf32> to vector<8x32xf32>
    %81 = vector.extract_strided_slice %63 {offsets = [0, 64], sizes = [8, 32], strides = [1, 1]} : vector<8x160xf32> to vector<8x32xf32>
    %82 = arith.addf %80, %81 : vector<8x32xf32>
    %83 = math.tanh %82 : vector<8x32xf32>
    %84 = vector.extract_strided_slice %61 {offsets = [0, 96], sizes = [8, 32], strides = [1, 1]} : vector<8x192xf32> to vector<8x32xf32>
    %85 = vector.extract_strided_slice %63 {offsets = [0, 96], sizes = [8, 32], strides = [1, 1]} : vector<8x160xf32> to vector<8x32xf32>
    %86 = arith.addf %84, %85 : vector<8x32xf32>
    %87 = arith.negf %86 : vector<8x32xf32>
    %88 = math.exp %87 : vector<8x32xf32>
    %cst_22 = arith.constant 1.000000e+00 : f32
    %89 = vector.broadcast %cst_22 : f32 to vector<8x32xf32>
    %90 = arith.addf %89, %88 : vector<8x32xf32>
    %91 = arith.divf %89, %90 : vector<8x32xf32>
    %92 = arith.mulf %71, %83 : vector<8x32xf32>
    %93 = arith.mulf %79, %40 : vector<8x32xf32>
    %94 = arith.addf %92, %93 : vector<8x32xf32>
    %95 = math.tanh %94 : vector<8x32xf32>
    %96 = arith.mulf %91, %95 : vector<8x32xf32>
    %97 = vector.extract_strided_slice %61 {offsets = [0, 128], sizes = [8, 32], strides = [1, 1]} : vector<8x192xf32> to vector<8x32xf32>
    %98 = vector.extract_strided_slice %63 {offsets = [0, 128], sizes = [8, 32], strides = [1, 1]} : vector<8x160xf32> to vector<8x32xf32>
    %99 = arith.addf %97, %98 : vector<8x32xf32>
    %100 = arith.negf %99 : vector<8x32xf32>
    %101 = math.exp %100 : vector<8x32xf32>
    %cst_23 = arith.constant 1.000000e+00 : f32
    %102 = vector.broadcast %cst_23 : f32 to vector<8x32xf32>
    %103 = arith.addf %102, %101 : vector<8x32xf32>
    %104 = arith.divf %102, %103 : vector<8x32xf32>
    %105 = vector.extract_strided_slice %61 {offsets = [0, 160], sizes = [8, 32], strides = [1, 1]} : vector<8x192xf32> to vector<8x32xf32>
    %106 = arith.mulf %104, %96 : vector<8x32xf32>
    %cst_24 = arith.constant 1.000000e+00 : f32
    %107 = vector.broadcast %cst_24 : f32 to vector<8x32xf32>
    %108 = arith.subf %107, %104 : vector<8x32xf32>
    %109 = arith.mulf %108, %105 : vector<8x32xf32>
    %110 = arith.addf %106, %109 : vector<8x32xf32>
    %c1_25 = arith.constant 1 : index
    %c0_26 = arith.constant 0 : index
    %c0_27 = arith.constant 0 : index
    %111 = vector.load %arg4[%c1_25, %c0_26, %c0_27] : memref<8x8x32xf32, #tpu.memory_space<vmem>>, vector<1x8x32xf32>
    %112 = vector.shape_cast %111 : vector<1x8x32xf32> to vector<8x32xf32>
    %113 = vector.shape_cast %110 : vector<8x32xf32> to vector<1x8x32xf32>
    tpu.vector_store %arg4[%c1_25, %c0_26, %c0_27], %113 {strides = array<i32>} : memref<8x8x32xf32, #tpu.memory_space<vmem>>, vector<1x8x32xf32>,
    %c2 = arith.constant 2 : index
    %c0_28 = arith.constant 0 : index
    %c0_29 = arith.constant 0 : index
    %114 = vector.load %arg2[%c2, %c0_28, %c0_29] : memref<8x8x192xf32, #tpu.memory_space<vmem>>, vector<1x8x192xf32>
    %115 = vector.shape_cast %114 : vector<1x8x192xf32> to vector<8x192xf32>
    %116 = arith.truncf %110 : vector<8x32xf32> to vector<8x32xbf16>
    %cst_30 = arith.constant dense<0.000000e+00> : vector<8x160xf32>
    %117 = tpu.matmul %116, %5, %cst_30 {dimension_numbers = #tpu.dot_dimension_numbers<[1], [0], [0], [1], [0, 0, 1, 1], [], []>} : vector<8x32xbf16>, vector<32x160xbf16>, vector<8x160xf32> -> vector<8x160xf32>
    %118 = vector.extract_strided_slice %115 {offsets = [0, 0], sizes = [8, 32], strides = [1, 1]} : vector<8x192xf32> to vector<8x32xf32>
    %119 = vector.extract_strided_slice %117 {offsets = [0, 0], sizes = [8, 32], strides = [1, 1]} : vector<8x160xf32> to vector<8x32xf32>
    %120 = arith.addf %118, %119 : vector<8x32xf32>
    %121 = arith.negf %120 : vector<8x32xf32>
    %122 = math.exp %121 : vector<8x32xf32>
    %cst_31 = arith.constant 1.000000e+00 : f32
    %123 = vector.broadcast %cst_31 : f32 to vector<8x32xf32>
    %124 = arith.addf %123, %122 : vector<8x32xf32>
    %125 = arith.divf %123, %124 : vector<8x32xf32>
    %126 = vector.extract_strided_slice %115 {offsets = [0, 32], sizes = [8, 32], strides = [1, 1]} : vector<8x192xf32> to vector<8x32xf32>
    %127 = vector.extract_strided_slice %117 {offsets = [0, 32], sizes = [8, 32], strides = [1, 1]} : vector<8x160xf32> to vector<8x32xf32>
    %128 = arith.addf %126, %127 : vector<8x32xf32>
    %129 = arith.negf %128 : vector<8x32xf32>
    %130 = math.exp %129 : vector<8x32xf32>
    %cst_32 = arith.constant 1.000000e+00 : f32
    %131 = vector.broadcast %cst_32 : f32 to vector<8x32xf32>
    %132 = arith.addf %131, %130 : vector<8x32xf32>
    %133 = arith.divf %131, %132 : vector<8x32xf32>
    %134 = vector.extract_strided_slice %115 {offsets = [0, 64], sizes = [8, 32], strides = [1, 1]} : vector<8x192xf32> to vector<8x32xf32>
    %135 = vector.extract_strided_slice %117 {offsets = [0, 64], sizes = [8, 32], strides = [1, 1]} : vector<8x160xf32> to vector<8x32xf32>
    %136 = arith.addf %134, %135 : vector<8x32xf32>
    %137 = math.tanh %136 : vector<8x32xf32>
    %138 = vector.extract_strided_slice %115 {offsets = [0, 96], sizes = [8, 32], strides = [1, 1]} : vector<8x192xf32> to vector<8x32xf32>
    %139 = vector.extract_strided_slice %117 {offsets = [0, 96], sizes = [8, 32], strides = [1, 1]} : vector<8x160xf32> to vector<8x32xf32>
    %140 = arith.addf %138, %139 : vector<8x32xf32>
    %141 = arith.negf %140 : vector<8x32xf32>
    %142 = math.exp %141 : vector<8x32xf32>
    %cst_33 = arith.constant 1.000000e+00 : f32
    %143 = vector.broadcast %cst_33 : f32 to vector<8x32xf32>
    %144 = arith.addf %143, %142 : vector<8x32xf32>
    %145 = arith.divf %143, %144 : vector<8x32xf32>
    %146 = arith.mulf %125, %137 : vector<8x32xf32>
    %147 = arith.mulf %133, %94 : vector<8x32xf32>
    %148 = arith.addf %146, %147 : vector<8x32xf32>
    %149 = math.tanh %148 : vector<8x32xf32>
    %150 = arith.mulf %145, %149 : vector<8x32xf32>
    %151 = vector.extract_strided_slice %115 {offsets = [0, 128], sizes = [8, 32], strides = [1, 1]} : vector<8x192xf32> to vector<8x32xf32>
    %152 = vector.extract_strided_slice %117 {offsets = [0, 128], sizes = [8, 32], strides = [1, 1]} : vector<8x160xf32> to vector<8x32xf32>
    %153 = arith.addf %151, %152 : vector<8x32xf32>
    %154 = arith.negf %153 : vector<8x32xf32>
    %155 = math.exp %154 : vector<8x32xf32>
    %cst_34 = arith.constant 1.000000e+00 : f32
    %156 = vector.broadcast %cst_34 : f32 to vector<8x32xf32>
    %157 = arith.addf %156, %155 : vector<8x32xf32>
    %158 = arith.divf %156, %157 : vector<8x32xf32>
    %159 = vector.extract_strided_slice %115 {offsets = [0, 160], sizes = [8, 32], strides = [1, 1]} : vector<8x192xf32> to vector<8x32xf32>
    %160 = arith.mulf %158, %150 : vector<8x32xf32>
    %cst_35 = arith.constant 1.000000e+00 : f32
    %161 = vector.broadcast %cst_35 : f32 to vector<8x32xf32>
    %162 = arith.subf %161, %158 : vector<8x32xf32>
    %163 = arith.mulf %162, %159 : vector<8x32xf32>
    %164 = arith.addf %160, %163 : vector<8x32xf32>
    %c2_36 = arith.constant 2 : index
    %c0_37 = arith.constant 0 : index
    %c0_38 = arith.constant 0 : index
    %165 = vector.load %arg4[%c2_36, %c0_37, %c0_38] : memref<8x8x32xf32, #tpu.memory_space<vmem>>, vector<1x8x32xf32>
    %166 = vector.shape_cast %165 : vector<1x8x32xf32> to vector<8x32xf32>
    %167 = vector.shape_cast %164 : vector<8x32xf32> to vector<1x8x32xf32>
    tpu.vector_store %arg4[%c2_36, %c0_37, %c0_38], %167 {strides = array<i32>} : memref<8x8x32xf32, #tpu.memory_space<vmem>>, vector<1x8x32xf32>,
    %c3 = arith.constant 3 : index
    %c0_39 = arith.constant 0 : index
    %c0_40 = arith.constant 0 : index
    %168 = vector.load %arg2[%c3, %c0_39, %c0_40] : memref<8x8x192xf32, #tpu.memory_space<vmem>>, vector<1x8x192xf32>
    %169 = vector.shape_cast %168 : vector<1x8x192xf32> to vector<8x192xf32>
    %170 = arith.truncf %164 : vector<8x32xf32> to vector<8x32xbf16>
    %cst_41 = arith.constant dense<0.000000e+00> : vector<8x160xf32>
    %171 = tpu.matmul %170, %5, %cst_41 {dimension_numbers = #tpu.dot_dimension_numbers<[1], [0], [0], [1], [0, 0, 1, 1], [], []>} : vector<8x32xbf16>, vector<32x160xbf16>, vector<8x160xf32> -> vector<8x160xf32>
    %172 = vector.extract_strided_slice %169 {offsets = [0, 0], sizes = [8, 32], strides = [1, 1]} : vector<8x192xf32> to vector<8x32xf32>
    %173 = vector.extract_strided_slice %171 {offsets = [0, 0], sizes = [8, 32], strides = [1, 1]} : vector<8x160xf32> to vector<8x32xf32>
    %174 = arith.addf %172, %173 : vector<8x32xf32>
    %175 = arith.negf %174 : vector<8x32xf32>
    %176 = math.exp %175 : vector<8x32xf32>
    %cst_42 = arith.constant 1.000000e+00 : f32
    %177 = vector.broadcast %cst_42 : f32 to vector<8x32xf32>
    %178 = arith.addf %177, %176 : vector<8x32xf32>
    %179 = arith.divf %177, %178 : vector<8x32xf32>
    %180 = vector.extract_strided_slice %169 {offsets = [0, 32], sizes = [8, 32], strides = [1, 1]} : vector<8x192xf32> to vector<8x32xf32>
    %181 = vector.extract_strided_slice %171 {offsets = [0, 32], sizes = [8, 32], strides = [1, 1]} : vector<8x160xf32> to vector<8x32xf32>
    %182 = arith.addf %180, %181 : vector<8x32xf32>
    %183 = arith.negf %182 : vector<8x32xf32>
    %184 = math.exp %183 : vector<8x32xf32>
    %cst_43 = arith.constant 1.000000e+00 : f32
    %185 = vector.broadcast %cst_43 : f32 to vector<8x32xf32>
    %186 = arith.addf %185, %184 : vector<8x32xf32>
    %187 = arith.divf %185, %186 : vector<8x32xf32>
    %188 = vector.extract_strided_slice %169 {offsets = [0, 64], sizes = [8, 32], strides = [1, 1]} : vector<8x192xf32> to vector<8x32xf32>
    %189 = vector.extract_strided_slice %171 {offsets = [0, 64], sizes = [8, 32], strides = [1, 1]} : vector<8x160xf32> to vector<8x32xf32>
    %190 = arith.addf %188, %189 : vector<8x32xf32>
    %191 = math.tanh %190 : vector<8x32xf32>
    %192 = vector.extract_strided_slice %169 {offsets = [0, 96], sizes = [8, 32], strides = [1, 1]} : vector<8x192xf32> to vector<8x32xf32>
    %193 = vector.extract_strided_slice %171 {offsets = [0, 96], sizes = [8, 32], strides = [1, 1]} : vector<8x160xf32> to vector<8x32xf32>
    %194 = arith.addf %192, %193 : vector<8x32xf32>
    %195 = arith.negf %194 : vector<8x32xf32>
    %196 = math.exp %195 : vector<8x32xf32>
    %cst_44 = arith.constant 1.000000e+00 : f32
    %197 = vector.broadcast %cst_44 : f32 to vector<8x32xf32>
    %198 = arith.addf %197, %196 : vector<8x32xf32>
    %199 = arith.divf %197, %198 : vector<8x32xf32>
    %200 = arith.mulf %179, %191 : vector<8x32xf32>
    %201 = arith.mulf %187, %148 : vector<8x32xf32>
    %202 = arith.addf %200, %201 : vector<8x32xf32>
    %203 = math.tanh %202 : vector<8x32xf32>
    %204 = arith.mulf %199, %203 : vector<8x32xf32>
    %205 = vector.extract_strided_slice %169 {offsets = [0, 128], sizes = [8, 32], strides = [1, 1]} : vector<8x192xf32> to vector<8x32xf32>
    %206 = vector.extract_strided_slice %171 {offsets = [0, 128], sizes = [8, 32], strides = [1, 1]} : vector<8x160xf32> to vector<8x32xf32>
    %207 = arith.addf %205, %206 : vector<8x32xf32>
    %208 = arith.negf %207 : vector<8x32xf32>
    %209 = math.exp %208 : vector<8x32xf32>
    %cst_45 = arith.constant 1.000000e+00 : f32
    %210 = vector.broadcast %cst_45 : f32 to vector<8x32xf32>
    %211 = arith.addf %210, %209 : vector<8x32xf32>
    %212 = arith.divf %210, %211 : vector<8x32xf32>
    %213 = vector.extract_strided_slice %169 {offsets = [0, 160], sizes = [8, 32], strides = [1, 1]} : vector<8x192xf32> to vector<8x32xf32>
    %214 = arith.mulf %212, %204 : vector<8x32xf32>
    %cst_46 = arith.constant 1.000000e+00 : f32
    %215 = vector.broadcast %cst_46 : f32 to vector<8x32xf32>
    %216 = arith.subf %215, %212 : vector<8x32xf32>
    %217 = arith.mulf %216, %213 : vector<8x32xf32>
    %218 = arith.addf %214, %217 : vector<8x32xf32>
    %c3_47 = arith.constant 3 : index
    %c0_48 = arith.constant 0 : index
    %c0_49 = arith.constant 0 : index
    %219 = vector.load %arg4[%c3_47, %c0_48, %c0_49] : memref<8x8x32xf32, #tpu.memory_space<vmem>>, vector<1x8x32xf32>
    %220 = vector.shape_cast %219 : vector<1x8x32xf32> to vector<8x32xf32>
    %221 = vector.shape_cast %218 : vector<8x32xf32> to vector<1x8x32xf32>
    tpu.vector_store %arg4[%c3_47, %c0_48, %c0_49], %221 {strides = array<i32>} : memref<8x8x32xf32, #tpu.memory_space<vmem>>, vector<1x8x32xf32>,
    %c4 = arith.constant 4 : index
    %c0_50 = arith.constant 0 : index
    %c0_51 = arith.constant 0 : index
    %222 = vector.load %arg2[%c4, %c0_50, %c0_51] : memref<8x8x192xf32, #tpu.memory_space<vmem>>, vector<1x8x192xf32>
    %223 = vector.shape_cast %222 : vector<1x8x192xf32> to vector<8x192xf32>
    %224 = arith.truncf %218 : vector<8x32xf32> to vector<8x32xbf16>
    %cst_52 = arith.constant dense<0.000000e+00> : vector<8x160xf32>
    %225 = tpu.matmul %224, %5, %cst_52 {dimension_numbers = #tpu.dot_dimension_numbers<[1], [0], [0], [1], [0, 0, 1, 1], [], []>} : vector<8x32xbf16>, vector<32x160xbf16>, vector<8x160xf32> -> vector<8x160xf32>
    %226 = vector.extract_strided_slice %223 {offsets = [0, 0], sizes = [8, 32], strides = [1, 1]} : vector<8x192xf32> to vector<8x32xf32>
    %227 = vector.extract_strided_slice %225 {offsets = [0, 0], sizes = [8, 32], strides = [1, 1]} : vector<8x160xf32> to vector<8x32xf32>
    %228 = arith.addf %226, %227 : vector<8x32xf32>
    %229 = arith.negf %228 : vector<8x32xf32>
    %230 = math.exp %229 : vector<8x32xf32>
    %cst_53 = arith.constant 1.000000e+00 : f32
    %231 = vector.broadcast %cst_53 : f32 to vector<8x32xf32>
    %232 = arith.addf %231, %230 : vector<8x32xf32>
    %233 = arith.divf %231, %232 : vector<8x32xf32>
    %234 = vector.extract_strided_slice %223 {offsets = [0, 32], sizes = [8, 32], strides = [1, 1]} : vector<8x192xf32> to vector<8x32xf32>
    %235 = vector.extract_strided_slice %225 {offsets = [0, 32], sizes = [8, 32], strides = [1, 1]} : vector<8x160xf32> to vector<8x32xf32>
    %236 = arith.addf %234, %235 : vector<8x32xf32>
    %237 = arith.negf %236 : vector<8x32xf32>
    %238 = math.exp %237 : vector<8x32xf32>
    %cst_54 = arith.constant 1.000000e+00 : f32
    %239 = vector.broadcast %cst_54 : f32 to vector<8x32xf32>
    %240 = arith.addf %239, %238 : vector<8x32xf32>
    %241 = arith.divf %239, %240 : vector<8x32xf32>
    %242 = vector.extract_strided_slice %223 {offsets = [0, 64], sizes = [8, 32], strides = [1, 1]} : vector<8x192xf32> to vector<8x32xf32>
    %243 = vector.extract_strided_slice %225 {offsets = [0, 64], sizes = [8, 32], strides = [1, 1]} : vector<8x160xf32> to vector<8x32xf32>
    %244 = arith.addf %242, %243 : vector<8x32xf32>
    %245 = math.tanh %244 : vector<8x32xf32>
    %246 = vector.extract_strided_slice %223 {offsets = [0, 96], sizes = [8, 32], strides = [1, 1]} : vector<8x192xf32> to vector<8x32xf32>
    %247 = vector.extract_strided_slice %225 {offsets = [0, 96], sizes = [8, 32], strides = [1, 1]} : vector<8x160xf32> to vector<8x32xf32>
    %248 = arith.addf %246, %247 : vector<8x32xf32>
    %249 = arith.negf %248 : vector<8x32xf32>
    %250 = math.exp %249 : vector<8x32xf32>
    %cst_55 = arith.constant 1.000000e+00 : f32
    %251 = vector.broadcast %cst_55 : f32 to vector<8x32xf32>
    %252 = arith.addf %251, %250 : vector<8x32xf32>
    %253 = arith.divf %251, %252 : vector<8x32xf32>
    %254 = arith.mulf %233, %245 : vector<8x32xf32>
    %255 = arith.mulf %241, %202 : vector<8x32xf32>
    %256 = arith.addf %254, %255 : vector<8x32xf32>
    %257 = math.tanh %256 : vector<8x32xf32>
    %258 = arith.mulf %253, %257 : vector<8x32xf32>
    %259 = vector.extract_strided_slice %223 {offsets = [0, 128], sizes = [8, 32], strides = [1, 1]} : vector<8x192xf32> to vector<8x32xf32>
    %260 = vector.extract_strided_slice %225 {offsets = [0, 128], sizes = [8, 32], strides = [1, 1]} : vector<8x160xf32> to vector<8x32xf32>
    %261 = arith.addf %259, %260 : vector<8x32xf32>
    %262 = arith.negf %261 : vector<8x32xf32>
    %263 = math.exp %262 : vector<8x32xf32>
    %cst_56 = arith.constant 1.000000e+00 : f32
    %264 = vector.broadcast %cst_56 : f32 to vector<8x32xf32>
    %265 = arith.addf %264, %263 : vector<8x32xf32>
    %266 = arith.divf %264, %265 : vector<8x32xf32>
    %267 = vector.extract_strided_slice %223 {offsets = [0, 160], sizes = [8, 32], strides = [1, 1]} : vector<8x192xf32> to vector<8x32xf32>
    %268 = arith.mulf %266, %258 : vector<8x32xf32>
    %cst_57 = arith.constant 1.000000e+00 : f32
    %269 = vector.broadcast %cst_57 : f32 to vector<8x32xf32>
    %270 = arith.subf %269, %266 : vector<8x32xf32>
    %271 = arith.mulf %270, %267 : vector<8x32xf32>
    %272 = arith.addf %268, %271 : vector<8x32xf32>
    %c4_58 = arith.constant 4 : index
    %c0_59 = arith.constant 0 : index
    %c0_60 = arith.constant 0 : index
    %273 = vector.load %arg4[%c4_58, %c0_59, %c0_60] : memref<8x8x32xf32, #tpu.memory_space<vmem>>, vector<1x8x32xf32>
    %274 = vector.shape_cast %273 : vector<1x8x32xf32> to vector<8x32xf32>
    %275 = vector.shape_cast %272 : vector<8x32xf32> to vector<1x8x32xf32>
    tpu.vector_store %arg4[%c4_58, %c0_59, %c0_60], %275 {strides = array<i32>} : memref<8x8x32xf32, #tpu.memory_space<vmem>>, vector<1x8x32xf32>,
    %c5 = arith.constant 5 : index
    %c0_61 = arith.constant 0 : index
    %c0_62 = arith.constant 0 : index
    %276 = vector.load %arg2[%c5, %c0_61, %c0_62] : memref<8x8x192xf32, #tpu.memory_space<vmem>>, vector<1x8x192xf32>
    %277 = vector.shape_cast %276 : vector<1x8x192xf32> to vector<8x192xf32>
    %278 = arith.truncf %272 : vector<8x32xf32> to vector<8x32xbf16>
    %cst_63 = arith.constant dense<0.000000e+00> : vector<8x160xf32>
    %279 = tpu.matmul %278, %5, %cst_63 {dimension_numbers = #tpu.dot_dimension_numbers<[1], [0], [0], [1], [0, 0, 1, 1], [], []>} : vector<8x32xbf16>, vector<32x160xbf16>, vector<8x160xf32> -> vector<8x160xf32>
    %280 = vector.extract_strided_slice %277 {offsets = [0, 0], sizes = [8, 32], strides = [1, 1]} : vector<8x192xf32> to vector<8x32xf32>
    %281 = vector.extract_strided_slice %279 {offsets = [0, 0], sizes = [8, 32], strides = [1, 1]} : vector<8x160xf32> to vector<8x32xf32>
    %282 = arith.addf %280, %281 : vector<8x32xf32>
    %283 = arith.negf %282 : vector<8x32xf32>
    %284 = math.exp %283 : vector<8x32xf32>
    %cst_64 = arith.constant 1.000000e+00 : f32
    %285 = vector.broadcast %cst_64 : f32 to vector<8x32xf32>
    %286 = arith.addf %285, %284 : vector<8x32xf32>
    %287 = arith.divf %285, %286 : vector<8x32xf32>
    %288 = vector.extract_strided_slice %277 {offsets = [0, 32], sizes = [8, 32], strides = [1, 1]} : vector<8x192xf32> to vector<8x32xf32>
    %289 = vector.extract_strided_slice %279 {offsets = [0, 32], sizes = [8, 32], strides = [1, 1]} : vector<8x160xf32> to vector<8x32xf32>
    %290 = arith.addf %288, %289 : vector<8x32xf32>
    %291 = arith.negf %290 : vector<8x32xf32>
    %292 = math.exp %291 : vector<8x32xf32>
    %cst_65 = arith.constant 1.000000e+00 : f32
    %293 = vector.broadcast %cst_65 : f32 to vector<8x32xf32>
    %294 = arith.addf %293, %292 : vector<8x32xf32>
    %295 = arith.divf %293, %294 : vector<8x32xf32>
    %296 = vector.extract_strided_slice %277 {offsets = [0, 64], sizes = [8, 32], strides = [1, 1]} : vector<8x192xf32> to vector<8x32xf32>
    %297 = vector.extract_strided_slice %279 {offsets = [0, 64], sizes = [8, 32], strides = [1, 1]} : vector<8x160xf32> to vector<8x32xf32>
    %298 = arith.addf %296, %297 : vector<8x32xf32>
    %299 = math.tanh %298 : vector<8x32xf32>
    %300 = vector.extract_strided_slice %277 {offsets = [0, 96], sizes = [8, 32], strides = [1, 1]} : vector<8x192xf32> to vector<8x32xf32>
    %301 = vector.extract_strided_slice %279 {offsets = [0, 96], sizes = [8, 32], strides = [1, 1]} : vector<8x160xf32> to vector<8x32xf32>
    %302 = arith.addf %300, %301 : vector<8x32xf32>
    %303 = arith.negf %302 : vector<8x32xf32>
    %304 = math.exp %303 : vector<8x32xf32>
    %cst_66 = arith.constant 1.000000e+00 : f32
    %305 = vector.broadcast %cst_66 : f32 to vector<8x32xf32>
    %306 = arith.addf %305, %304 : vector<8x32xf32>
    %307 = arith.divf %305, %306 : vector<8x32xf32>
    %308 = arith.mulf %287, %299 : vector<8x32xf32>
    %309 = arith.mulf %295, %256 : vector<8x32xf32>
    %310 = arith.addf %308, %309 : vector<8x32xf32>
    %311 = math.tanh %310 : vector<8x32xf32>
    %312 = arith.mulf %307, %311 : vector<8x32xf32>
    %313 = vector.extract_strided_slice %277 {offsets = [0, 128], sizes = [8, 32], strides = [1, 1]} : vector<8x192xf32> to vector<8x32xf32>
    %314 = vector.extract_strided_slice %279 {offsets = [0, 128], sizes = [8, 32], strides = [1, 1]} : vector<8x160xf32> to vector<8x32xf32>
    %315 = arith.addf %313, %314 : vector<8x32xf32>
    %316 = arith.negf %315 : vector<8x32xf32>
    %317 = math.exp %316 : vector<8x32xf32>
    %cst_67 = arith.constant 1.000000e+00 : f32
    %318 = vector.broadcast %cst_67 : f32 to vector<8x32xf32>
    %319 = arith.addf %318, %317 : vector<8x32xf32>
    %320 = arith.divf %318, %319 : vector<8x32xf32>
    %321 = vector.extract_strided_slice %277 {offsets = [0, 160], sizes = [8, 32], strides = [1, 1]} : vector<8x192xf32> to vector<8x32xf32>
    %322 = arith.mulf %320, %312 : vector<8x32xf32>
    %cst_68 = arith.constant 1.000000e+00 : f32
    %323 = vector.broadcast %cst_68 : f32 to vector<8x32xf32>
    %324 = arith.subf %323, %320 : vector<8x32xf32>
    %325 = arith.mulf %324, %321 : vector<8x32xf32>
    %326 = arith.addf %322, %325 : vector<8x32xf32>
    %c5_69 = arith.constant 5 : index
    %c0_70 = arith.constant 0 : index
    %c0_71 = arith.constant 0 : index
    %327 = vector.load %arg4[%c5_69, %c0_70, %c0_71] : memref<8x8x32xf32, #tpu.memory_space<vmem>>, vector<1x8x32xf32>
    %328 = vector.shape_cast %327 : vector<1x8x32xf32> to vector<8x32xf32>
    %329 = vector.shape_cast %326 : vector<8x32xf32> to vector<1x8x32xf32>
    tpu.vector_store %arg4[%c5_69, %c0_70, %c0_71], %329 {strides = array<i32>} : memref<8x8x32xf32, #tpu.memory_space<vmem>>, vector<1x8x32xf32>,
    %c6 = arith.constant 6 : index
    %c0_72 = arith.constant 0 : index
    %c0_73 = arith.constant 0 : index
    %330 = vector.load %arg2[%c6, %c0_72, %c0_73] : memref<8x8x192xf32, #tpu.memory_space<vmem>>, vector<1x8x192xf32>
    %331 = vector.shape_cast %330 : vector<1x8x192xf32> to vector<8x192xf32>
    %332 = arith.truncf %326 : vector<8x32xf32> to vector<8x32xbf16>
    %cst_74 = arith.constant dense<0.000000e+00> : vector<8x160xf32>
    %333 = tpu.matmul %332, %5, %cst_74 {dimension_numbers = #tpu.dot_dimension_numbers<[1], [0], [0], [1], [0, 0, 1, 1], [], []>} : vector<8x32xbf16>, vector<32x160xbf16>, vector<8x160xf32> -> vector<8x160xf32>
    %334 = vector.extract_strided_slice %331 {offsets = [0, 0], sizes = [8, 32], strides = [1, 1]} : vector<8x192xf32> to vector<8x32xf32>
    %335 = vector.extract_strided_slice %333 {offsets = [0, 0], sizes = [8, 32], strides = [1, 1]} : vector<8x160xf32> to vector<8x32xf32>
    %336 = arith.addf %334, %335 : vector<8x32xf32>
    %337 = arith.negf %336 : vector<8x32xf32>
    %338 = math.exp %337 : vector<8x32xf32>
    %cst_75 = arith.constant 1.000000e+00 : f32
    %339 = vector.broadcast %cst_75 : f32 to vector<8x32xf32>
    %340 = arith.addf %339, %338 : vector<8x32xf32>
    %341 = arith.divf %339, %340 : vector<8x32xf32>
    %342 = vector.extract_strided_slice %331 {offsets = [0, 32], sizes = [8, 32], strides = [1, 1]} : vector<8x192xf32> to vector<8x32xf32>
    %343 = vector.extract_strided_slice %333 {offsets = [0, 32], sizes = [8, 32], strides = [1, 1]} : vector<8x160xf32> to vector<8x32xf32>
    %344 = arith.addf %342, %343 : vector<8x32xf32>
    %345 = arith.negf %344 : vector<8x32xf32>
    %346 = math.exp %345 : vector<8x32xf32>
    %cst_76 = arith.constant 1.000000e+00 : f32
    %347 = vector.broadcast %cst_76 : f32 to vector<8x32xf32>
    %348 = arith.addf %347, %346 : vector<8x32xf32>
    %349 = arith.divf %347, %348 : vector<8x32xf32>
    %350 = vector.extract_strided_slice %331 {offsets = [0, 64], sizes = [8, 32], strides = [1, 1]} : vector<8x192xf32> to vector<8x32xf32>
    %351 = vector.extract_strided_slice %333 {offsets = [0, 64], sizes = [8, 32], strides = [1, 1]} : vector<8x160xf32> to vector<8x32xf32>
    %352 = arith.addf %350, %351 : vector<8x32xf32>
    %353 = math.tanh %352 : vector<8x32xf32>
    %354 = vector.extract_strided_slice %331 {offsets = [0, 96], sizes = [8, 32], strides = [1, 1]} : vector<8x192xf32> to vector<8x32xf32>
    %355 = vector.extract_strided_slice %333 {offsets = [0, 96], sizes = [8, 32], strides = [1, 1]} : vector<8x160xf32> to vector<8x32xf32>
    %356 = arith.addf %354, %355 : vector<8x32xf32>
    %357 = arith.negf %356 : vector<8x32xf32>
    %358 = math.exp %357 : vector<8x32xf32>
    %cst_77 = arith.constant 1.000000e+00 : f32
    %359 = vector.broadcast %cst_77 : f32 to vector<8x32xf32>
    %360 = arith.addf %359, %358 : vector<8x32xf32>
    %361 = arith.divf %359, %360 : vector<8x32xf32>
    %362 = arith.mulf %341, %353 : vector<8x32xf32>
    %363 = arith.mulf %349, %310 : vector<8x32xf32>
    %364 = arith.addf %362, %363 : vector<8x32xf32>
    %365 = math.tanh %364 : vector<8x32xf32>
    %366 = arith.mulf %361, %365 : vector<8x32xf32>
    %367 = vector.extract_strided_slice %331 {offsets = [0, 128], sizes = [8, 32], strides = [1, 1]} : vector<8x192xf32> to vector<8x32xf32>
    %368 = vector.extract_strided_slice %333 {offsets = [0, 128], sizes = [8, 32], strides = [1, 1]} : vector<8x160xf32> to vector<8x32xf32>
    %369 = arith.addf %367, %368 : vector<8x32xf32>
    %370 = arith.negf %369 : vector<8x32xf32>
    %371 = math.exp %370 : vector<8x32xf32>
    %cst_78 = arith.constant 1.000000e+00 : f32
    %372 = vector.broadcast %cst_78 : f32 to vector<8x32xf32>
    %373 = arith.addf %372, %371 : vector<8x32xf32>
    %374 = arith.divf %372, %373 : vector<8x32xf32>
    %375 = vector.extract_strided_slice %331 {offsets = [0, 160], sizes = [8, 32], strides = [1, 1]} : vector<8x192xf32> to vector<8x32xf32>
    %376 = arith.mulf %374, %366 : vector<8x32xf32>
    %cst_79 = arith.constant 1.000000e+00 : f32
    %377 = vector.broadcast %cst_79 : f32 to vector<8x32xf32>
    %378 = arith.subf %377, %374 : vector<8x32xf32>
    %379 = arith.mulf %378, %375 : vector<8x32xf32>
    %380 = arith.addf %376, %379 : vector<8x32xf32>
    %c6_80 = arith.constant 6 : index
    %c0_81 = arith.constant 0 : index
    %c0_82 = arith.constant 0 : index
    %381 = vector.load %arg4[%c6_80, %c0_81, %c0_82] : memref<8x8x32xf32, #tpu.memory_space<vmem>>, vector<1x8x32xf32>
    %382 = vector.shape_cast %381 : vector<1x8x32xf32> to vector<8x32xf32>
    %383 = vector.shape_cast %380 : vector<8x32xf32> to vector<1x8x32xf32>
    tpu.vector_store %arg4[%c6_80, %c0_81, %c0_82], %383 {strides = array<i32>} : memref<8x8x32xf32, #tpu.memory_space<vmem>>, vector<1x8x32xf32>,
    %c7 = arith.constant 7 : index
    %c0_83 = arith.constant 0 : index
    %c0_84 = arith.constant 0 : index
    %384 = vector.load %arg2[%c7, %c0_83, %c0_84] : memref<8x8x192xf32, #tpu.memory_space<vmem>>, vector<1x8x192xf32>
    %385 = vector.shape_cast %384 : vector<1x8x192xf32> to vector<8x192xf32>
    %386 = arith.truncf %380 : vector<8x32xf32> to vector<8x32xbf16>
    %cst_85 = arith.constant dense<0.000000e+00> : vector<8x160xf32>
    %387 = tpu.matmul %386, %5, %cst_85 {dimension_numbers = #tpu.dot_dimension_numbers<[1], [0], [0], [1], [0, 0, 1, 1], [], []>} : vector<8x32xbf16>, vector<32x160xbf16>, vector<8x160xf32> -> vector<8x160xf32>
    %388 = vector.extract_strided_slice %385 {offsets = [0, 0], sizes = [8, 32], strides = [1, 1]} : vector<8x192xf32> to vector<8x32xf32>
    %389 = vector.extract_strided_slice %387 {offsets = [0, 0], sizes = [8, 32], strides = [1, 1]} : vector<8x160xf32> to vector<8x32xf32>
    %390 = arith.addf %388, %389 : vector<8x32xf32>
    %391 = arith.negf %390 : vector<8x32xf32>
    %392 = math.exp %391 : vector<8x32xf32>
    %cst_86 = arith.constant 1.000000e+00 : f32
    %393 = vector.broadcast %cst_86 : f32 to vector<8x32xf32>
    %394 = arith.addf %393, %392 : vector<8x32xf32>
    %395 = arith.divf %393, %394 : vector<8x32xf32>
    %396 = vector.extract_strided_slice %385 {offsets = [0, 32], sizes = [8, 32], strides = [1, 1]} : vector<8x192xf32> to vector<8x32xf32>
    %397 = vector.extract_strided_slice %387 {offsets = [0, 32], sizes = [8, 32], strides = [1, 1]} : vector<8x160xf32> to vector<8x32xf32>
    %398 = arith.addf %396, %397 : vector<8x32xf32>
    %399 = arith.negf %398 : vector<8x32xf32>
    %400 = math.exp %399 : vector<8x32xf32>
    %cst_87 = arith.constant 1.000000e+00 : f32
    %401 = vector.broadcast %cst_87 : f32 to vector<8x32xf32>
    %402 = arith.addf %401, %400 : vector<8x32xf32>
    %403 = arith.divf %401, %402 : vector<8x32xf32>
    %404 = vector.extract_strided_slice %385 {offsets = [0, 64], sizes = [8, 32], strides = [1, 1]} : vector<8x192xf32> to vector<8x32xf32>
    %405 = vector.extract_strided_slice %387 {offsets = [0, 64], sizes = [8, 32], strides = [1, 1]} : vector<8x160xf32> to vector<8x32xf32>
    %406 = arith.addf %404, %405 : vector<8x32xf32>
    %407 = math.tanh %406 : vector<8x32xf32>
    %408 = vector.extract_strided_slice %385 {offsets = [0, 96], sizes = [8, 32], strides = [1, 1]} : vector<8x192xf32> to vector<8x32xf32>
    %409 = vector.extract_strided_slice %387 {offsets = [0, 96], sizes = [8, 32], strides = [1, 1]} : vector<8x160xf32> to vector<8x32xf32>
    %410 = arith.addf %408, %409 : vector<8x32xf32>
    %411 = arith.negf %410 : vector<8x32xf32>
    %412 = math.exp %411 : vector<8x32xf32>
    %cst_88 = arith.constant 1.000000e+00 : f32
    %413 = vector.broadcast %cst_88 : f32 to vector<8x32xf32>
    %414 = arith.addf %413, %412 : vector<8x32xf32>
    %415 = arith.divf %413, %414 : vector<8x32xf32>
    %416 = arith.mulf %395, %407 : vector<8x32xf32>
    %417 = arith.mulf %403, %364 : vector<8x32xf32>
    %418 = arith.addf %416, %417 : vector<8x32xf32>
    %419 = math.tanh %418 : vector<8x32xf32>
    %420 = arith.mulf %415, %419 : vector<8x32xf32>
    %421 = vector.extract_strided_slice %385 {offsets = [0, 128], sizes = [8, 32], strides = [1, 1]} : vector<8x192xf32> to vector<8x32xf32>
    %422 = vector.extract_strided_slice %387 {offsets = [0, 128], sizes = [8, 32], strides = [1, 1]} : vector<8x160xf32> to vector<8x32xf32>
    %423 = arith.addf %421, %422 : vector<8x32xf32>
    %424 = arith.negf %423 : vector<8x32xf32>
    %425 = math.exp %424 : vector<8x32xf32>
    %cst_89 = arith.constant 1.000000e+00 : f32
    %426 = vector.broadcast %cst_89 : f32 to vector<8x32xf32>
    %427 = arith.addf %426, %425 : vector<8x32xf32>
    %428 = arith.divf %426, %427 : vector<8x32xf32>
    %429 = vector.extract_strided_slice %385 {offsets = [0, 160], sizes = [8, 32], strides = [1, 1]} : vector<8x192xf32> to vector<8x32xf32>
    %430 = arith.mulf %428, %420 : vector<8x32xf32>
    %cst_90 = arith.constant 1.000000e+00 : f32
    %431 = vector.broadcast %cst_90 : f32 to vector<8x32xf32>
    %432 = arith.subf %431, %428 : vector<8x32xf32>
    %433 = arith.mulf %432, %429 : vector<8x32xf32>
    %434 = arith.addf %430, %433 : vector<8x32xf32>
    %c7_91 = arith.constant 7 : index
    %c0_92 = arith.constant 0 : index
    %c0_93 = arith.constant 0 : index
    %435 = vector.load %arg4[%c7_91, %c0_92, %c0_93] : memref<8x8x32xf32, #tpu.memory_space<vmem>>, vector<1x8x32xf32>
    %436 = vector.shape_cast %435 : vector<1x8x32xf32> to vector<8x32xf32>
    %437 = vector.shape_cast %434 : vector<8x32xf32> to vector<1x8x32xf32>
    tpu.vector_store %arg4[%c7_91, %c0_92, %c0_93], %437 {strides = array<i32>} : memref<8x8x32xf32, #tpu.memory_space<vmem>>, vector<1x8x32xf32>,
    %c0_94 = arith.constant 0 : index
    %c0_95 = arith.constant 0 : index
    %438 = vector.load %arg7[%c0_94, %c0_95] : memref<8x32xf32, #tpu.memory_space<vmem>>, vector<8x32xf32>
    tpu.vector_store %arg7[%c0_94, %c0_95], %434 {strides = array<i32>} : memref<8x32xf32, #tpu.memory_space<vmem>>, vector<8x32xf32>,
    %c0_96 = arith.constant 0 : index
    %c0_97 = arith.constant 0 : index
    %439 = vector.load %arg8[%c0_96, %c0_97] : memref<8x32xf32, #tpu.memory_space<vmem>>, vector<8x32xf32>
    tpu.vector_store %arg8[%c0_96, %c0_97], %418 {strides = array<i32>} : memref<8x32xf32, #tpu.memory_space<vmem>>, vector<8x32xf32>,
    %c0_i32_98 = arith.constant 0 : i32
    %440 = arith.cmpi eq, %arg1, %c0_i32_98 : i32
    %441 = arith.extui %440 : i1 to i32
    %c0_i32_99 = arith.constant 0 : i32
    %442 = arith.cmpi ne, %441, %c0_i32_99 : i32
    scf.if %442 {
      %c0_100 = arith.constant 0 : index
      %c0_101 = arith.constant 0 : index
      %443 = vector.load %arg5[%c0_100, %c0_101] : memref<8x32xf32, #tpu.memory_space<vmem>>, vector<8x32xf32>
      tpu.vector_store %arg5[%c0_100, %c0_101], %434 {strides = array<i32>} : memref<8x32xf32, #tpu.memory_space<vmem>>, vector<8x32xf32>,
      %c0_102 = arith.constant 0 : index
      %c0_103 = arith.constant 0 : index
      %444 = vector.load %arg6[%c0_102, %c0_103] : memref<8x32xf32, #tpu.memory_space<vmem>>, vector<8x32xf32>
      tpu.vector_store %arg6[%c0_102, %c0_103], %418 {strides = array<i32>} : memref<8x32xf32, #tpu.memory_space<vmem>>, vector<8x32xf32>,
    } else {
    }
    return
  }
  func.func @transform_0(%arg0: i32, %arg1: i32) -> (i32, i32, i32) {
    %c0_i32 = arith.constant 0 : i32
    %c0_i32_0 = arith.constant 0 : i32
    return %arg1, %arg0, %c0_i32 : i32, i32, i32
  }
  func.func @transform_1(%arg0: i32, %arg1: i32) -> (i32, i32) {
    %c0_i32 = arith.constant 0 : i32
    %c0_i32_0 = arith.constant 0 : i32
    %c0_i32_1 = arith.constant 0 : i32
    return %c0_i32, %c0_i32_0 : i32, i32
  }
  func.func @transform_2(%arg0: i32, %arg1: i32) -> (i32, i32, i32) {
    %c0_i32 = arith.constant 0 : i32
    %c0_i32_0 = arith.constant 0 : i32
    return %arg1, %arg0, %c0_i32 : i32, i32, i32
  }
  func.func @transform_3(%arg0: i32, %arg1: i32) -> (i32, i32) {
    %c0_i32 = arith.constant 0 : i32
    %c0_i32_0 = arith.constant 0 : i32
    return %arg0, %c0_i32 : i32, i32
  }
  func.func @transform_4(%arg0: i32, %arg1: i32) -> (i32, i32) {
    %c0_i32 = arith.constant 0 : i32
    %c0_i32_0 = arith.constant 0 : i32
    return %arg0, %c0_i32 : i32, i32
  }
}

</mosaic_0001>

<llo_original>
// kernel: tpu_custom_call.1
$region0: #{tpu_custom_call.1}
  #allocation0 [shape = 'u32[]', space=smem, size = 0x4, offset = 0x4, fixed_abs, tag = 'smem constant byte address 0x4 - core index']
  #allocation1 [shape = 'u32[144,128]{1,0:T(1,128)}', space=vmem, size = 0x12000, scoped, tag = 'internal scratch']
  #allocation2 [shape = 'f32[8,32]{1,0:T(8,128)}', space=vmem, size = 0x1000, scoped, tag = 'scratch operand']
  #allocation3 [shape = 'f32[8,32]{1,0:T(8,128)}', space=vmem, size = 0x1000, scoped, tag = 'scratch operand']
  %s0 = inlined_call_operand.hbm [shape: f32[8,8,192], index: 0, kind: input, shape index: {}]
  %s1 = inlined_call_operand.hbm [shape: bf16[32,160], index: 1, kind: input, shape index: {}]
  %s2 = inlined_call_operand.hbm [shape: f32[8,8,32], index: 2, kind: output, shape index: {0}]
  %s3 = inlined_call_operand.hbm [shape: f32[8,32], index: 3, kind: output, shape index: {1}]
  %s4 = inlined_call_operand.hbm [shape: f32[8,32], index: 4, kind: output, shape index: {2}]
  %5 = xla_tuple %s2, %s3, %s4
  %s6 = sld [smem:[#allocation0]]
  $region50: #{tpu_custom_call.1} parent=0
    _
  %s8 = ssub.s32 1, %s6
  %s9 = scalar_select 0, %s8, %s6
  $region1: #{tpu_custom_call.1} parent=0
    #allocation4 [shape = 'u8[65536]{0}', space=vmem, size = 0x10000, scoped, tag = 'input window, operand 0, single buffered']
    #allocation5 [shape = 's32[1]{0}', space=sflag, size = 0x4, scoped, tag = 'scoped memory for tpu_custom_call.1']
    #allocation6 [shape = 's32[1]{0}', space=sflag, size = 0x4, scoped, tag = 'scoped memory for tpu_custom_call.1']
    #allocation7 [shape = 'u8[16384]{0}', space=vmem, size = 0x4000, scoped, tag = 'input window, operand 1, single buffered']
    #allocation8 [shape = 's32[1]{0}', space=sflag, size = 0x4, scoped, tag = 'scoped memory for tpu_custom_call.1']
    #allocation9 [shape = 'u8[32768]{0}', space=vmem, size = 0x8000, scoped, tag = 'output window, operand 0, single buffered']
    #allocation10 [shape = 'u8[4096]{0}', space=vmem, size = 0x1000, scoped, tag = 'output window, operand 1, single buffered']
    #allocation11 [shape = 's32[1]{0}', space=sflag, size = 0x4, scoped, tag = 'scoped memory for tpu_custom_call.1']
    #allocation12 [shape = 'u8[4096]{0}', space=vmem, size = 0x1000, scoped, tag = 'output window, operand 2, single buffered']
    %10 = vsyncpa [#allocation5], 0
    %11 = vsyncpa [#allocation8], 0
    %12 = vsyncpa [#allocation6], 0
    %13 = vsyncpa [#allocation11], 0
    // Predicated region
    $region2: #{tpu_custom_call.1} parent=1 // pred_check
      _
    $region3: #{tpu_custom_call.1} parent=1 // pred_check_branch
      %15 = sbr.rel (0) target = $region5
    $region4: #{tpu_custom_call.1} parent=1 // pred_region
      %s17 = ssub.s32 2048, 2048
      %18 = vsyncadd [#allocation5], %s17
      %s19 = sshll.u32 [#allocation4], 4
      %s20 = int_to_ptr.vmem [resolvable:$true] %s19
      %25 = dma.hbm_to_vmem [thread:$0]  %s0, 2048, %s20, [#allocation5], 256, 256, 16
    $region5: #{tpu_custom_call.1} parent=1 // pred_fallthru
      _
    // Predicated region
    $region6: #{tpu_custom_call.1} parent=1 // pred_check
      _
    $region7: #{tpu_custom_call.1} parent=1 // pred_check_branch
      %27 = sbr.rel (0) target = $region9
    $region8: #{tpu_custom_call.1} parent=1 // pred_region
      %s29 = ssub.s32 512, 512
      %30 = vsyncadd [#allocation8], %s29
      %s31 = sshll.u32 [#allocation7], 4
      %s32 = int_to_ptr.vmem [resolvable:$true] %s31
      %37 = dma.hbm_to_vmem [thread:$0]  %s1, 512, %s32, [#allocation8], 128, 128, 8
    $region9: #{tpu_custom_call.1} parent=1 // pred_fallthru
      _
    // Predicated region
    $region10: #{tpu_custom_call.1} parent=1 // pred_check
      _
    $region11: #{tpu_custom_call.1} parent=1 // pred_check_branch
      %39 = sbr.rel (0) target = $region13
    $region12: #{tpu_custom_call.1} parent=1 // pred_region
      %40 = dma.done [#allocation5], 2048
    $region13: #{tpu_custom_call.1} parent=1 // pred_fallthru
      _
    // Predicated region
    $region14: #{tpu_custom_call.1} parent=1 // pred_check
      _
    $region15: #{tpu_custom_call.1} parent=1 // pred_check_branch
      %42 = sbr.rel (0) target = $region17
    $region16: #{tpu_custom_call.1} parent=1 // pred_region
      %43 = dma.done [#allocation8], 512
    $region17: #{tpu_custom_call.1} parent=1 // pred_fallthru
      _
    %p45 = scmp.eq.s32.totalorder 0, 0
    // Predicated region
    $region18: #{tpu_custom_call.1} parent=1 // pred_check
      %p46 = pneg %p45
    $region19: #{tpu_custom_call.1} parent=1 // pred_check_branch
      %48 = sbr.rel (%p46) target = $region21
    $region20: #{tpu_custom_call.1} parent=1 // pred_region
      %vm49 = vcmask 261120
      %50 = vst.msk [vmem:[#allocation2] sm:$0xff] %vm49, 0.0
      %51 = vst.msk [vmem:[#allocation3] sm:$0xff] %vm49, 0.0
    $region21: #{tpu_custom_call.1} parent=1 // pred_fallthru
      _
    %v52 = vld [vmem:[#allocation2] sm:$0xff]
    %v53 = vld [vmem:[#allocation3] sm:$0xff]
    %v54 = vld [vmem:[#allocation7] sm:$0xff]
    %v55 = vld [vmem:[#allocation7 + $0x8] sm:$0xff]
    %v56 = vld [vmem:[#allocation7 + $0x10] sm:$0xff]
    %v57 = vld [vmem:[#allocation7 + $0x18] sm:$0xff]
    %v58 = vld [vmem:[#allocation4] sm:$0xff]
    %v59 = vld [vmem:[#allocation4 + $0x8] sm:$0xff]
    %v60 = vpack.c.bf16 %v52, %v52
    %v65 = vunpack.c.l.b16 %v54
    %v66 = vunpack.c.h.b16 %v54
    %v67 = vunpack.c.l.b16 %v55
    %v68 = vunpack.c.h.b16 %v55
    %v69 = vunpack.c.l.b16 %v56
    %v70 = vunpack.c.h.b16 %v56
    %v71 = vunpack.c.l.b16 %v57
    %v72 = vunpack.c.h.b16 %v57
    %v73 = vpack.c.b16 %v67, %v65
    %v74 = vpack.c.b16 %v68, %v66
    %v75 = vpack.c.b16 %v71, %v69
    %v76 = vpack.c.b16 %v72, %v70
    %vm81 = vcmask 261120
    %v83 = vsel %vm81, %v60, 0
    %85 = vmatprep.subr.bf16.mxu0 0
    %86 = vmatpush1.bf16.msra.mxu0 0
    %87 = vmatprep.subr.bf16.mxu0 0
    %88 = vmatpush1.bf16.msra.mxu0 0
    %89 = vmatprep.subr.bf16.mxu0 0
    %90 = vmatpush1.bf16.msra.mxu0 0
    %91 = vmatprep.subr.bf16.mxu0 0
    %92 = vmatpush1.bf16.msra.mxu0 0
    %93 = vmatprep.subr.bf16.mxu0 0
    %94 = vmatpush1.bf16.msra.mxu0 0
    %95 = vmatprep.subr.bf16.mxu0 0
    %96 = vmatpush1.bf16.msra.mxu0 0
    %97 = vmatprep.subr.bf16.mxu0 %v76
    %98 = vmatpush1.bf16.msra.mxu0 %v75
    %99 = vmatprep.subr.bf16.mxu0 %v74
    %100 = vmatpush1.bf16.msra.mxu0 %v73
    %101 = vmatprep.subr.bf16.mxu0 0
    %102 = vmatpush2.bf16.msra.mxu0 0
    %103 = vmatprep.subr.bf16.mxu0 0
    %104 = vmatpush2.bf16.msra.mxu0 0
    %105 = vmatprep.subr.bf16.mxu0 0
    %106 = vmatpush2.bf16.msra.mxu0 0
    %107 = vmatprep.subr.bf16.mxu0 0
    %108 = vmatpush2.bf16.msra.mxu0 0
    %109 = vmatprep.subr.bf16.mxu0 0
    %110 = vmatpush2.bf16.msra.mxu0 0
    %111 = vmatprep.subr.bf16.mxu0 0
    %112 = vmatpush2.bf16.msra.mxu0 0
    %113 = vmatprep.subr.bf16.mxu0 0
    %114 = vmatpush2.bf16.msra.mxu0 0
    %115 = vmatprep.subr.bf16.mxu0 0
    %116 = vmatpush2.bf16.msra.mxu0 0
    %117 = vmatprep.mubr.bf16.mxu0 0
    %118 = vmatmul.mubr.bf16.gmra.mxu0 %v83
    %v119 = vpop.f32.mrf.mxu0
    %v120 = vadd.f32 0.0, %v119
    %v121 = vpop.f32.mrf.mxu0
    %v122 = vadd.f32 0.0, %v121
    %v123 = vpop.f32.mrf.mxu0
    %v124 = vpop.f32.mrf.mxu0
    %125 = vdwg.mxu0
    %v126 = vadd.f32 %v58, %v120
    %v127 = vxor.u32 %v126, 2147483648
    %v128 = vmul.f32 %v127, 1.442695
    %v129 = vpow.pop %v128
    %v130 = vadd.f32 %v129, 1.0
    %v131 = vrcp.pop %v130
    %v132 = vmul.f32 1.0, %v131
    %v133 = vtanh.pop %v126
    %135 = vrot.lane.b32.xlu0 %v133, 64
    %v136 = vpop.permute.xlu0 %135
    %v138 = vmul.f32 %v132, %v136
    %140 = vrot.lane.b32.xlu0 %v53, 32
    %v141 = vpop.permute.xlu0 %140
    %v143 = vmul.f32 %v132, %v141
    %145 = vrot.lane.b32.xlu0 %v143, 96
    %v146 = vpop.permute.xlu0 %145
    %v148 = vadd.f32 %v138, %v146
    %v149 = vtanh.pop %v148
    %151 = vrot.lane.b32.xlu0 %v149, 96
    %v152 = vpop.permute.xlu0 %151
    %v154 = vmul.f32 %v132, %v152
    %v155 = vadd.f32 %v59, %v122
    %v156 = vxor.u32 %v155, 2147483648
    %v157 = vmul.f32 %v156, 1.442695
    %v158 = vpow.pop %v157
    %v159 = vadd.f32 %v158, 1.0
    %v160 = vrcp.pop %v159
    %v161 = vmul.f32 1.0, %v160
    %163 = vrot.lane.b32.xlu0 %v154, 32
    %v164 = vpop.permute.xlu0 %163
    %v166 = vmul.f32 %v161, %v164
    %v167 = vsub.f32 1.0, %v161
    %169 = vrot.lane.b32.xlu0 %v59, 96
    %v170 = vpop.permute.xlu0 %169
    %v172 = vmul.f32 %v167, %v170
    %v173 = vadd.f32 %v166, %v172
    %174 = vst.msk [vmem:[#allocation9] sm:$0xff] %vm81, %v173
    %s175 = scalar_lea.vmem [#allocation4], 16
    %v176 = vld [vmem:[%s175] sm:$0xff]
    %v177 = vld [vmem:[%s175 + $0x8] sm:$0xff]
    %v178 = vpack.c.bf16 %v173, %v173
    %v180 = vsel %vm81, %v178, 0
    %182 = vmatprep.subr.bf16.mxu0 0
    %183 = vmatpush1.bf16.msra.mxu0 0
    %184 = vmatprep.subr.bf16.mxu0 0
    %185 = vmatpush1.bf16.msra.mxu0 0
    %186 = vmatprep.subr.bf16.mxu0 0
    %187 = vmatpush1.bf16.msra.mxu0 0
    %188 = vmatprep.subr.bf16.mxu0 0
    %189 = vmatpush1.bf16.msra.mxu0 0
    %190 = vmatprep.subr.bf16.mxu0 0
    %191 = vmatpush1.bf16.msra.mxu0 0
    %192 = vmatprep.subr.bf16.mxu0 0
    %193 = vmatpush1.bf16.msra.mxu0 0
    %194 = vmatprep.subr.bf16.mxu0 %v76
    %195 = vmatpush1.bf16.msra.mxu0 %v75
    %196 = vmatprep.subr.bf16.mxu0 %v74
    %197 = vmatpush1.bf16.msra.mxu0 %v73
    %198 = vmatprep.subr.bf16.mxu0 0
    %199 = vmatpush2.bf16.msra.mxu0 0
    %200 = vmatprep.subr.bf16.mxu0 0
    %201 = vmatpush2.bf16.msra.mxu0 0
    %202 = vmatprep.subr.bf16.mxu0 0
    %203 = vmatpush2.bf16.msra.mxu0 0
    %204 = vmatprep.subr.bf16.mxu0 0
    %205 = vmatpush2.bf16.msra.mxu0 0
    %206 = vmatprep.subr.bf16.mxu0 0
    %207 = vmatpush2.bf16.msra.mxu0 0
    %208 = vmatprep.subr.bf16.mxu0 0
    %209 = vmatpush2.bf16.msra.mxu0 0
    %210 = vmatprep.subr.bf16.mxu0 0
    %211 = vmatpush2.bf16.msra.mxu0 0
    %212 = vmatprep.subr.bf16.mxu0 0
    %213 = vmatpush2.bf16.msra.mxu0 0
    %214 = vmatprep.mubr.bf16.mxu0 0
    %215 = vmatmul.mubr.bf16.gmra.mxu0 %v180
    %v216 = vpop.f32.mrf.mxu0
    %v217 = vadd.f32 0.0, %v216
    %v218 = vpop.f32.mrf.mxu0
    %v219 = vadd.f32 0.0, %v218
    %v220 = vpop.f32.mrf.mxu0
    %v221 = vpop.f32.mrf.mxu0
    %222 = vdwg.mxu0
    %v223 = vadd.f32 %v176, %v217
    %v224 = vxor.u32 %v223, 2147483648
    %v225 = vmul.f32 %v224, 1.442695
    %v226 = vpow.pop %v225
    %v227 = vadd.f32 %v226, 1.0
    %v228 = vrcp.pop %v227
    %v229 = vmul.f32 1.0, %v228
    %v230 = vtanh.pop %v223
    %232 = vrot.lane.b32.xlu0 %v230, 64
    %v233 = vpop.permute.xlu0 %232
    %v235 = vmul.f32 %v229, %v233
    %237 = vrot.lane.b32.xlu0 %v148, 32
    %v238 = vpop.permute.xlu0 %237
    %v240 = vmul.f32 %v229, %v238
    %242 = vrot.lane.b32.xlu0 %v240, 96
    %v243 = vpop.permute.xlu0 %242
    %v245 = vadd.f32 %v235, %v243
    %v246 = vtanh.pop %v245
    %248 = vrot.lane.b32.xlu0 %v246, 96
    %v249 = vpop.permute.xlu0 %248
    %v251 = vmul.f32 %v229, %v249
    %v252 = vadd.f32 %v177, %v219
    %v253 = vxor.u32 %v252, 2147483648
    %v254 = vmul.f32 %v253, 1.442695
    %v255 = vpow.pop %v254
    %v256 = vadd.f32 %v255, 1.0
    %v257 = vrcp.pop %v256
    %v258 = vmul.f32 1.0, %v257
    %260 = vrot.lane.b32.xlu0 %v251, 32
    %v261 = vpop.permute.xlu0 %260
    %v263 = vmul.f32 %v258, %v261
    %v264 = vsub.f32 1.0, %v258
    %266 = vrot.lane.b32.xlu0 %v177, 96
    %v267 = vpop.permute.xlu0 %266
    %v269 = vmul.f32 %v264, %v267
    %v270 = vadd.f32 %v263, %v269
    %s271 = scalar_lea.vmem [#allocation9], 8
    %272 = vst.msk [vmem:[%s271] sm:$0xff] %vm81, %v270
    %s273 = scalar_lea.vmem [#allocation4], 32
    %v274 = vld [vmem:[%s273] sm:$0xff]
    %v275 = vld [vmem:[%s273 + $0x8] sm:$0xff]
    %v276 = vpack.c.bf16 %v270, %v270
    %v278 = vsel %vm81, %v276, 0
    %280 = vmatprep.subr.bf16.mxu0 0
    %281 = vmatpush1.bf16.msra.mxu0 0
    %282 = vmatprep.subr.bf16.mxu0 0
    %283 = vmatpush1.bf16.msra.mxu0 0
    %284 = vmatprep.subr.bf16.mxu0 0
    %285 = vmatpush1.bf16.msra.mxu0 0
    %286 = vmatprep.subr.bf16.mxu0 0
    %287 = vmatpush1.bf16.msra.mxu0 0
    %288 = vmatprep.subr.bf16.mxu0 0
    %289 = vmatpush1.bf16.msra.mxu0 0
    %290 = vmatprep.subr.bf16.mxu0 0
    %291 = vmatpush1.bf16.msra.mxu0 0
    %292 = vmatprep.subr.bf16.mxu0 %v76
    %293 = vmatpush1.bf16.msra.mxu0 %v75
    %294 = vmatprep.subr.bf16.mxu0 %v74
    %295 = vmatpush1.bf16.msra.mxu0 %v73
    %296 = vmatprep.subr.bf16.mxu0 0
    %297 = vmatpush2.bf16.msra.mxu0 0
    %298 = vmatprep.subr.bf16.mxu0 0
    %299 = vmatpush2.bf16.msra.mxu0 0
    %300 = vmatprep.subr.bf16.mxu0 0
    %301 = vmatpush2.bf16.msra.mxu0 0
    %302 = vmatprep.subr.bf16.mxu0 0
    %303 = vmatpush2.bf16.msra.mxu0 0
    %304 = vmatprep.subr.bf16.mxu0 0
    %305 = vmatpush2.bf16.msra.mxu0 0
    %306 = vmatprep.subr.bf16.mxu0 0
    %307 = vmatpush2.bf16.msra.mxu0 0
    %308 = vmatprep.subr.bf16.mxu0 0
    %309 = vmatpush2.bf16.msra.mxu0 0
    %310 = vmatprep.subr.bf16.mxu0 0
    %311 = vmatpush2.bf16.msra.mxu0 0
    %312 = vmatprep.mubr.bf16.mxu0 0
    %313 = vmatmul.mubr.bf16.gmra.mxu0 %v278
    %v314 = vpop.f32.mrf.mxu0
    %v315 = vadd.f32 0.0, %v314
    %v316 = vpop.f32.mrf.mxu0
    %v317 = vadd.f32 0.0, %v316
    %v318 = vpop.f32.mrf.mxu0
    %v319 = vpop.f32.mrf.mxu0
    %320 = vdwg.mxu0
    %v321 = vadd.f32 %v274, %v315
    %v322 = vxor.u32 %v321, 2147483648
    %v323 = vmul.f32 %v322, 1.442695
    %v324 = vpow.pop %v323
    %v325 = vadd.f32 %v324, 1.0
    %v326 = vrcp.pop %v325
    %v327 = vmul.f32 1.0, %v326
    %v328 = vtanh.pop %v321
    %330 = vrot.lane.b32.xlu0 %v328, 64
    %v331 = vpop.permute.xlu0 %330
    %v333 = vmul.f32 %v327, %v331
    %335 = vrot.lane.b32.xlu0 %v245, 32
    %v336 = vpop.permute.xlu0 %335
    %v338 = vmul.f32 %v327, %v336
    %340 = vrot.lane.b32.xlu0 %v338, 96
    %v341 = vpop.permute.xlu0 %340
    %v343 = vadd.f32 %v333, %v341
    %v344 = vtanh.pop %v343
    %346 = vrot.lane.b32.xlu0 %v344, 96
    %v347 = vpop.permute.xlu0 %346
    %v349 = vmul.f32 %v327, %v347
    %v350 = vadd.f32 %v275, %v317
    %v351 = vxor.u32 %v350, 2147483648
    %v352 = vmul.f32 %v351, 1.442695
    %v353 = vpow.pop %v352
    %v354 = vadd.f32 %v353, 1.0
    %v355 = vrcp.pop %v354
    %v356 = vmul.f32 1.0, %v355
    %358 = vrot.lane.b32.xlu0 %v349, 32
    %v359 = vpop.permute.xlu0 %358
    %v361 = vmul.f32 %v356, %v359
    %v362 = vsub.f32 1.0, %v356
    %364 = vrot.lane.b32.xlu0 %v275, 96
    %v365 = vpop.permute.xlu0 %364
    %v367 = vmul.f32 %v362, %v365
    %v368 = vadd.f32 %v361, %v367
    %s369 = scalar_lea.vmem [#allocation9], 16
    %370 = vst.msk [vmem:[%s369] sm:$0xff] %vm81, %v368
    %s371 = scalar_lea.vmem [#allocation4], 48
    %v372 = vld [vmem:[%s371] sm:$0xff]
    %v373 = vld [vmem:[%s371 + $0x8] sm:$0xff]
    %v374 = vpack.c.bf16 %v368, %v368
    %v376 = vsel %vm81, %v374, 0
    %378 = vmatprep.subr.bf16.mxu0 0
    %379 = vmatpush1.bf16.msra.mxu0 0
    %380 = vmatprep.subr.bf16.mxu0 0
    %381 = vmatpush1.bf16.msra.mxu0 0
    %382 = vmatprep.subr.bf16.mxu0 0
    %383 = vmatpush1.bf16.msra.mxu0 0
    %384 = vmatprep.subr.bf16.mxu0 0
    %385 = vmatpush1.bf16.msra.mxu0 0
    %386 = vmatprep.subr.bf16.mxu0 0
    %387 = vmatpush1.bf16.msra.mxu0 0
    %388 = vmatprep.subr.bf16.mxu0 0
    %389 = vmatpush1.bf16.msra.mxu0 0
    %390 = vmatprep.subr.bf16.mxu0 %v76
    %391 = vmatpush1.bf16.msra.mxu0 %v75
    %392 = vmatprep.subr.bf16.mxu0 %v74
    %393 = vmatpush1.bf16.msra.mxu0 %v73
    %394 = vmatprep.subr.bf16.mxu0 0
    %395 = vmatpush2.bf16.msra.mxu0 0
    %396 = vmatprep.subr.bf16.mxu0 0
    %397 = vmatpush2.bf16.msra.mxu0 0
    %398 = vmatprep.subr.bf16.mxu0 0
    %399 = vmatpush2.bf16.msra.mxu0 0
    %400 = vmatprep.subr.bf16.mxu0 0
    %401 = vmatpush2.bf16.msra.mxu0 0
    %402 = vmatprep.subr.bf16.mxu0 0
    %403 = vmatpush2.bf16.msra.mxu0 0
    %404 = vmatprep.subr.bf16.mxu0 0
    %405 = vmatpush2.bf16.msra.mxu0 0
    %406 = vmatprep.subr.bf16.mxu0 0
    %407 = vmatpush2.bf16.msra.mxu0 0
    %408 = vmatprep.subr.bf16.mxu0 0
    %409 = vmatpush2.bf16.msra.mxu0 0
    %410 = vmatprep.mubr.bf16.mxu0 0
    %411 = vmatmul.mubr.bf16.gmra.mxu0 %v376
    %v412 = vpop.f32.mrf.mxu0
    %v413 = vadd.f32 0.0, %v412
    %v414 = vpop.f32.mrf.mxu0
    %v415 = vadd.f32 0.0, %v414
    %v416 = vpop.f32.mrf.mxu0
    %v417 = vpop.f32.mrf.mxu0
    %418 = vdwg.mxu0
    %v419 = vadd.f32 %v372, %v413
    %v420 = vxor.u32 %v419, 2147483648
    %v421 = vmul.f32 %v420, 1.442695
    %v422 = vpow.pop %v421
    %v423 = vadd.f32 %v422, 1.0
    %v424 = vrcp.pop %v423
    %v425 = vmul.f32 1.0, %v424
    %v426 = vtanh.pop %v419
    %428 = vrot.lane.b32.xlu0 %v426, 64
    %v429 = vpop.permute.xlu0 %428
    %v431 = vmul.f32 %v425, %v429
    %433 = vrot.lane.b32.xlu0 %v343, 32
    %v434 = vpop.permute.xlu0 %433
    %v436 = vmul.f32 %v425, %v434
    %438 = vrot.lane.b32.xlu0 %v436, 96
    %v439 = vpop.permute.xlu0 %438
    %v441 = vadd.f32 %v431, %v439
    %v442 = vtanh.pop %v441
    %444 = vrot.lane.b32.xlu0 %v442, 96
    %v445 = vpop.permute.xlu0 %444
    %v447 = vmul.f32 %v425, %v445
    %v448 = vadd.f32 %v373, %v415
    %v449 = vxor.u32 %v448, 2147483648
    %v450 = vmul.f32 %v449, 1.442695
    %v451 = vpow.pop %v450
    %v452 = vadd.f32 %v451, 1.0
    %v453 = vrcp.pop %v452
    %v454 = vmul.f32 1.0, %v453
    %456 = vrot.lane.b32.xlu0 %v447, 32
    %v457 = vpop.permute.xlu0 %456
    %v459 = vmul.f32 %v454, %v457
    %v460 = vsub.f32 1.0, %v454
    %462 = vrot.lane.b32.xlu0 %v373, 96
    %v463 = vpop.permute.xlu0 %462
    %v465 = vmul.f32 %v460, %v463
    %v466 = vadd.f32 %v459, %v465
    %s467 = scalar_lea.vmem [#allocation9], 24
    %468 = vst.msk [vmem:[%s467] sm:$0xff] %vm81, %v466
    %s469 = scalar_lea.vmem [#allocation4], 64
    %v470 = vld [vmem:[%s469] sm:$0xff]
    %v471 = vld [vmem:[%s469 + $0x8] sm:$0xff]
    %v472 = vpack.c.bf16 %v466, %v466
    %v474 = vsel %vm81, %v472, 0
    %476 = vmatprep.subr.bf16.mxu0 0
    %477 = vmatpush1.bf16.msra.mxu0 0
    %478 = vmatprep.subr.bf16.mxu0 0
    %479 = vmatpush1.bf16.msra.mxu0 0
    %480 = vmatprep.subr.bf16.mxu0 0
    %481 = vmatpush1.bf16.msra.mxu0 0
    %482 = vmatprep.subr.bf16.mxu0 0
    %483 = vmatpush1.bf16.msra.mxu0 0
    %484 = vmatprep.subr.bf16.mxu0 0
    %485 = vmatpush1.bf16.msra.mxu0 0
    %486 = vmatprep.subr.bf16.mxu0 0
    %487 = vmatpush1.bf16.msra.mxu0 0
    %488 = vmatprep.subr.bf16.mxu0 %v76
    %489 = vmatpush1.bf16.msra.mxu0 %v75
    %490 = vmatprep.subr.bf16.mxu0 %v74
    %491 = vmatpush1.bf16.msra.mxu0 %v73
    %492 = vmatprep.subr.bf16.mxu0 0
    %493 = vmatpush2.bf16.msra.mxu0 0
    %494 = vmatprep.subr.bf16.mxu0 0
    %495 = vmatpush2.bf16.msra.mxu0 0
    %496 = vmatprep.subr.bf16.mxu0 0
    %497 = vmatpush2.bf16.msra.mxu0 0
    %498 = vmatprep.subr.bf16.mxu0 0
    %499 = vmatpush2.bf16.msra.mxu0 0
    %500 = vmatprep.subr.bf16.mxu0 0
    %501 = vmatpush2.bf16.msra.mxu0 0
    %502 = vmatprep.subr.bf16.mxu0 0
    %503 = vmatpush2.bf16.msra.mxu0 0
    %504 = vmatprep.subr.bf16.mxu0 0
    %505 = vmatpush2.bf16.msra.mxu0 0
    %506 = vmatprep.subr.bf16.mxu0 0
    %507 = vmatpush2.bf16.msra.mxu0 0
    %508 = vmatprep.mubr.bf16.mxu0 0
    %509 = vmatmul.mubr.bf16.gmra.mxu0 %v474
    %v510 = vpop.f32.mrf.mxu0
    %v511 = vadd.f32 0.0, %v510
    %v512 = vpop.f32.mrf.mxu0
    %v513 = vadd.f32 0.0, %v512
    %v514 = vpop.f32.mrf.mxu0
    %v515 = vpop.f32.mrf.mxu0
    %516 = vdwg.mxu0
    %v517 = vadd.f32 %v470, %v511
    %v518 = vxor.u32 %v517, 2147483648
    %v519 = vmul.f32 %v518, 1.442695
    %v520 = vpow.pop %v519
    %v521 = vadd.f32 %v520, 1.0
    %v522 = vrcp.pop %v521
    %v523 = vmul.f32 1.0, %v522
    %v524 = vtanh.pop %v517
    %526 = vrot.lane.b32.xlu0 %v524, 64
    %v527 = vpop.permute.xlu0 %526
    %v529 = vmul.f32 %v523, %v527
    %531 = vrot.lane.b32.xlu0 %v441, 32
    %v532 = vpop.permute.xlu0 %531
    %v534 = vmul.f32 %v523, %v532
    %536 = vrot.lane.b32.xlu0 %v534, 96
    %v537 = vpop.permute.xlu0 %536
    %v539 = vadd.f32 %v529, %v537
    %v540 = vtanh.pop %v539
    %542 = vrot.lane.b32.xlu0 %v540, 96
    %v543 = vpop.permute.xlu0 %542
    %v545 = vmul.f32 %v523, %v543
    %v546 = vadd.f32 %v471, %v513
    %v547 = vxor.u32 %v546, 2147483648
    %v548 = vmul.f32 %v547, 1.442695
    %v549 = vpow.pop %v548
    %v550 = vadd.f32 %v549, 1.0
    %v551 = vrcp.pop %v550
    %v552 = vmul.f32 1.0, %v551
    %554 = vrot.lane.b32.xlu0 %v545, 32
    %v555 = vpop.permute.xlu0 %554
    %v557 = vmul.f32 %v552, %v555
    %v558 = vsub.f32 1.0, %v552
    %560 = vrot.lane.b32.xlu0 %v471, 96
    %v561 = vpop.permute.xlu0 %560
    %v563 = vmul.f32 %v558, %v561
    %v564 = vadd.f32 %v557, %v563
    %s565 = scalar_lea.vmem [#allocation9], 32
    %566 = vst.msk [vmem:[%s565] sm:$0xff] %vm81, %v564
    %s567 = scalar_lea.vmem [#allocation4], 80
    %v568 = vld [vmem:[%s567] sm:$0xff]
    %v569 = vld [vmem:[%s567 + $0x8] sm:$0xff]
    %v570 = vpack.c.bf16 %v564, %v564
    %v572 = vsel %vm81, %v570, 0
    %574 = vmatprep.subr.bf16.mxu0 0
    %575 = vmatpush1.bf16.msra.mxu0 0
    %576 = vmatprep.subr.bf16.mxu0 0
    %577 = vmatpush1.bf16.msra.mxu0 0
    %578 = vmatprep.subr.bf16.mxu0 0
    %579 = vmatpush1.bf16.msra.mxu0 0
    %580 = vmatprep.subr.bf16.mxu0 0
    %581 = vmatpush1.bf16.msra.mxu0 0
    %582 = vmatprep.subr.bf16.mxu0 0
    %583 = vmatpush1.bf16.msra.mxu0 0
    %584 = vmatprep.subr.bf16.mxu0 0
    %585 = vmatpush1.bf16.msra.mxu0 0
    %586 = vmatprep.subr.bf16.mxu0 %v76
    %587 = vmatpush1.bf16.msra.mxu0 %v75
    %588 = vmatprep.subr.bf16.mxu0 %v74
    %589 = vmatpush1.bf16.msra.mxu0 %v73
    %590 = vmatprep.subr.bf16.mxu0 0
    %591 = vmatpush2.bf16.msra.mxu0 0
    %592 = vmatprep.subr.bf16.mxu0 0
    %593 = vmatpush2.bf16.msra.mxu0 0
    %594 = vmatprep.subr.bf16.mxu0 0
    %595 = vmatpush2.bf16.msra.mxu0 0
    %596 = vmatprep.subr.bf16.mxu0 0
    %597 = vmatpush2.bf16.msra.mxu0 0
    %598 = vmatprep.subr.bf16.mxu0 0
    %599 = vmatpush2.bf16.msra.mxu0 0
    %600 = vmatprep.subr.bf16.mxu0 0
    %601 = vmatpush2.bf16.msra.mxu0 0
    %602 = vmatprep.subr.bf16.mxu0 0
    %603 = vmatpush2.bf16.msra.mxu0 0
    %604 = vmatprep.subr.bf16.mxu0 0
    %605 = vmatpush2.bf16.msra.mxu0 0
    %606 = vmatprep.mubr.bf16.mxu0 0
    %607 = vmatmul.mubr.bf16.gmra.mxu0 %v572
    %v608 = vpop.f32.mrf.mxu0
    %v609 = vadd.f32 0.0, %v608
    %v610 = vpop.f32.mrf.mxu0
    %v611 = vadd.f32 0.0, %v610
    %v612 = vpop.f32.mrf.mxu0
    %v613 = vpop.f32.mrf.mxu0
    %614 = vdwg.mxu0
    %v615 = vadd.f32 %v568, %v609
    %v616 = vxor.u32 %v615, 2147483648
    %v617 = vmul.f32 %v616, 1.442695
    %v618 = vpow.pop %v617
    %v619 = vadd.f32 %v618, 1.0
    %v620 = vrcp.pop %v619
    %v621 = vmul.f32 1.0, %v620
    %v622 = vtanh.pop %v615
    %624 = vrot.lane.b32.xlu0 %v622, 64
    %v625 = vpop.permute.xlu0 %624
    %v627 = vmul.f32 %v621, %v625
    %629 = vrot.lane.b32.xlu0 %v539, 32
    %v630 = vpop.permute.xlu0 %629
    %v632 = vmul.f32 %v621, %v630
    %634 = vrot.lane.b32.xlu0 %v632, 96
    %v635 = vpop.permute.xlu0 %634
    %v637 = vadd.f32 %v627, %v635
    %v638 = vtanh.pop %v637
    %640 = vrot.lane.b32.xlu0 %v638, 96
    %v641 = vpop.permute.xlu0 %640
    %v643 = vmul.f32 %v621, %v641
    %v644 = vadd.f32 %v569, %v611
    %v645 = vxor.u32 %v644, 2147483648
    %v646 = vmul.f32 %v645, 1.442695
    %v647 = vpow.pop %v646
    %v648 = vadd.f32 %v647, 1.0
    %v649 = vrcp.pop %v648
    %v650 = vmul.f32 1.0, %v649
    %652 = vrot.lane.b32.xlu0 %v643, 32
    %v653 = vpop.permute.xlu0 %652
    %v655 = vmul.f32 %v650, %v653
    %v656 = vsub.f32 1.0, %v650
    %658 = vrot.lane.b32.xlu0 %v569, 96
    %v659 = vpop.permute.xlu0 %658
    %v661 = vmul.f32 %v656, %v659
    %v662 = vadd.f32 %v655, %v661
    %s663 = scalar_lea.vmem [#allocation9], 40
    %664 = vst.msk [vmem:[%s663] sm:$0xff] %vm81, %v662
    %s665 = scalar_lea.vmem [#allocation4], 96
    %v666 = vld [vmem:[%s665] sm:$0xff]
    %v667 = vld [vmem:[%s665 + $0x8] sm:$0xff]
    %v668 = vpack.c.bf16 %v662, %v662
    %v670 = vsel %vm81, %v668, 0
    %672 = vmatprep.subr.bf16.mxu0 0
    %673 = vmatpush1.bf16.msra.mxu0 0
    %674 = vmatprep.subr.bf16.mxu0 0
    %675 = vmatpush1.bf16.msra.mxu0 0
    %676 = vmatprep.subr.bf16.mxu0 0
    %677 = vmatpush1.bf16.msra.mxu0 0
    %678 = vmatprep.subr.bf16.mxu0 0
    %679 = vmatpush1.bf16.msra.mxu0 0
    %680 = vmatprep.subr.bf16.mxu0 0
    %681 = vmatpush1.bf16.msra.mxu0 0
    %682 = vmatprep.subr.bf16.mxu0 0
    %683 = vmatpush1.bf16.msra.mxu0 0
    %684 = vmatprep.subr.bf16.mxu0 %v76
    %685 = vmatpush1.bf16.msra.mxu0 %v75
    %686 = vmatprep.subr.bf16.mxu0 %v74
    %687 = vmatpush1.bf16.msra.mxu0 %v73
    %688 = vmatprep.subr.bf16.mxu0 0
    %689 = vmatpush2.bf16.msra.mxu0 0
    %690 = vmatprep.subr.bf16.mxu0 0
    %691 = vmatpush2.bf16.msra.mxu0 0
    %692 = vmatprep.subr.bf16.mxu0 0
    %693 = vmatpush2.bf16.msra.mxu0 0
    %694 = vmatprep.subr.bf16.mxu0 0
    %695 = vmatpush2.bf16.msra.mxu0 0
    %696 = vmatprep.subr.bf16.mxu0 0
    %697 = vmatpush2.bf16.msra.mxu0 0
    %698 = vmatprep.subr.bf16.mxu0 0
    %699 = vmatpush2.bf16.msra.mxu0 0
    %700 = vmatprep.subr.bf16.mxu0 0
    %701 = vmatpush2.bf16.msra.mxu0 0
    %702 = vmatprep.subr.bf16.mxu0 0
    %703 = vmatpush2.bf16.msra.mxu0 0
    %704 = vmatprep.mubr.bf16.mxu0 0
    %705 = vmatmul.mubr.bf16.gmra.mxu0 %v670
    %v706 = vpop.f32.mrf.mxu0
    %v707 = vadd.f32 0.0, %v706
    %v708 = vpop.f32.mrf.mxu0
    %v709 = vadd.f32 0.0, %v708
    %v710 = vpop.f32.mrf.mxu0
    %v711 = vpop.f32.mrf.mxu0
    %712 = vdwg.mxu0
    %v713 = vadd.f32 %v666, %v707
    %v714 = vxor.u32 %v713, 2147483648
    %v715 = vmul.f32 %v714, 1.442695
    %v716 = vpow.pop %v715
    %v717 = vadd.f32 %v716, 1.0
    %v718 = vrcp.pop %v717
    %v719 = vmul.f32 1.0, %v718
    %v720 = vtanh.pop %v713
    %722 = vrot.lane.b32.xlu0 %v720, 64
    %v723 = vpop.permute.xlu0 %722
    %v725 = vmul.f32 %v719, %v723
    %727 = vrot.lane.b32.xlu0 %v637, 32
    %v728 = vpop.permute.xlu0 %727
    %v730 = vmul.f32 %v719, %v728
    %732 = vrot.lane.b32.xlu0 %v730, 96
    %v733 = vpop.permute.xlu0 %732
    %v735 = vadd.f32 %v725, %v733
    %v736 = vtanh.pop %v735
    %738 = vrot.lane.b32.xlu0 %v736, 96
    %v739 = vpop.permute.xlu0 %738
    %v741 = vmul.f32 %v719, %v739
    %v742 = vadd.f32 %v667, %v709
    %v743 = vxor.u32 %v742, 2147483648
    %v744 = vmul.f32 %v743, 1.442695
    %v745 = vpow.pop %v744
    %v746 = vadd.f32 %v745, 1.0
    %v747 = vrcp.pop %v746
    %v748 = vmul.f32 1.0, %v747
    %750 = vrot.lane.b32.xlu0 %v741, 32
    %v751 = vpop.permute.xlu0 %750
    %v753 = vmul.f32 %v748, %v751
    %v754 = vsub.f32 1.0, %v748
    %756 = vrot.lane.b32.xlu0 %v667, 96
    %v757 = vpop.permute.xlu0 %756
    %v759 = vmul.f32 %v754, %v757
    %v760 = vadd.f32 %v753, %v759
    %s761 = scalar_lea.vmem [#allocation9], 48
    %762 = vst.msk [vmem:[%s761] sm:$0xff] %vm81, %v760
    %s763 = scalar_lea.vmem [#allocation4], 112
    %v764 = vld [vmem:[%s763] sm:$0xff]
    %v765 = vld [vmem:[%s763 + $0x8] sm:$0xff]
    %v766 = vpack.c.bf16 %v760, %v760
    %v768 = vsel %vm81, %v766, 0
    %770 = vmatprep.subr.bf16.mxu0 0
    %771 = vmatpush1.bf16.msra.mxu0 0
    %772 = vmatprep.subr.bf16.mxu0 0
    %773 = vmatpush1.bf16.msra.mxu0 0
    %774 = vmatprep.subr.bf16.mxu0 0
    %775 = vmatpush1.bf16.msra.mxu0 0
    %776 = vmatprep.subr.bf16.mxu0 0
    %777 = vmatpush1.bf16.msra.mxu0 0
    %778 = vmatprep.subr.bf16.mxu0 0
    %779 = vmatpush1.bf16.msra.mxu0 0
    %780 = vmatprep.subr.bf16.mxu0 0
    %781 = vmatpush1.bf16.msra.mxu0 0
    %782 = vmatprep.subr.bf16.mxu0 %v76
    %783 = vmatpush1.bf16.msra.mxu0 %v75
    %784 = vmatprep.subr.bf16.mxu0 %v74
    %785 = vmatpush1.bf16.msra.mxu0 %v73
    %786 = vmatprep.subr.bf16.mxu0 0
    %787 = vmatpush2.bf16.msra.mxu0 0
    %788 = vmatprep.subr.bf16.mxu0 0
    %789 = vmatpush2.bf16.msra.mxu0 0
    %790 = vmatprep.subr.bf16.mxu0 0
    %791 = vmatpush2.bf16.msra.mxu0 0
    %792 = vmatprep.subr.bf16.mxu0 0
    %793 = vmatpush2.bf16.msra.mxu0 0
    %794 = vmatprep.subr.bf16.mxu0 0
    %795 = vmatpush2.bf16.msra.mxu0 0
    %796 = vmatprep.subr.bf16.mxu0 0
    %797 = vmatpush2.bf16.msra.mxu0 0
    %798 = vmatprep.subr.bf16.mxu0 0
    %799 = vmatpush2.bf16.msra.mxu0 0
    %800 = vmatprep.subr.bf16.mxu0 0
    %801 = vmatpush2.bf16.msra.mxu0 0
    %802 = vmatprep.mubr.bf16.mxu0 0
    %803 = vmatmul.mubr.bf16.gmra.mxu0 %v768
    %v804 = vpop.f32.mrf.mxu0
    %v805 = vadd.f32 0.0, %v804
    %v806 = vpop.f32.mrf.mxu0
    %v807 = vadd.f32 0.0, %v806
    %v808 = vpop.f32.mrf.mxu0
    %v809 = vpop.f32.mrf.mxu0
    %810 = vdwg.mxu0
    %v811 = vadd.f32 %v764, %v805
    %v812 = vxor.u32 %v811, 2147483648
    %v813 = vmul.f32 %v812, 1.442695
    %v814 = vpow.pop %v813
    %v815 = vadd.f32 %v814, 1.0
    %v816 = vrcp.pop %v815
    %v817 = vmul.f32 1.0, %v816
    %v818 = vtanh.pop %v811
    %820 = vrot.lane.b32.xlu0 %v818, 64
    %v821 = vpop.permute.xlu0 %820
    %v823 = vmul.f32 %v817, %v821
    %825 = vrot.lane.b32.xlu0 %v735, 32
    %v826 = vpop.permute.xlu0 %825
    %v828 = vmul.f32 %v817, %v826
    %830 = vrot.lane.b32.xlu0 %v828, 96
    %v831 = vpop.permute.xlu0 %830
    %v833 = vadd.f32 %v823, %v831
    %v834 = vtanh.pop %v833
    %836 = vrot.lane.b32.xlu0 %v834, 96
    %v837 = vpop.permute.xlu0 %836
    %v839 = vmul.f32 %v817, %v837
    %v840 = vadd.f32 %v765, %v807
    %v841 = vxor.u32 %v840, 2147483648
    %v842 = vmul.f32 %v841, 1.442695
    %v843 = vpow.pop %v842
    %v844 = vadd.f32 %v843, 1.0
    %v845 = vrcp.pop %v844
    %v846 = vmul.f32 1.0, %v845
    %848 = vrot.lane.b32.xlu0 %v839, 32
    %v849 = vpop.permute.xlu0 %848
    %v851 = vmul.f32 %v846, %v849
    %v852 = vsub.f32 1.0, %v846
    %854 = vrot.lane.b32.xlu0 %v765, 96
    %v855 = vpop.permute.xlu0 %854
    %v857 = vmul.f32 %v852, %v855
    %v858 = vadd.f32 %v851, %v857
    %s859 = scalar_lea.vmem [#allocation9], 56
    %860 = vst.msk [vmem:[%s859] sm:$0xff] %vm81, %v858
    %861 = vst.msk [vmem:[#allocation2] sm:$0xff] %vm81, %v858
    %862 = vst.msk [vmem:[#allocation3] sm:$0xff] %vm81, %v833
    // Predicated region
    $region22: #{tpu_custom_call.1} parent=1 // pred_check
      %p863 = pneg %p45
    $region23: #{tpu_custom_call.1} parent=1 // pred_check_branch
      %865 = sbr.rel (%p863) target = $region25
    $region24: #{tpu_custom_call.1} parent=1 // pred_region
      %866 = vst.msk [vmem:[#allocation10] sm:$0xff] %vm81, %v858
      %867 = vst.msk [vmem:[#allocation12] sm:$0xff] %vm81, %v833
    $region25: #{tpu_custom_call.1} parent=1 // pred_fallthru
      _
    // Predicated region
    $region26: #{tpu_custom_call.1} parent=1 // pred_check
      _
    $region27: #{tpu_custom_call.1} parent=1 // pred_check_branch
      %869 = sbr.rel (0) target = $region29
    $region28: #{tpu_custom_call.1} parent=1 // pred_region
      %s871 = ssub.s32 1024, 1024
      %872 = vsyncadd [#allocation6], %s871
      %s873 = sshll.u32 [#allocation9], 4
      %s874 = int_to_ptr.vmem [resolvable:$true] %s873
      %879 = dma.vmem_to_hbm [thread:$0]  %s874, 1024, %s2, [#allocation6], 128, 128, 8
    $region29: #{tpu_custom_call.1} parent=1 // pred_fallthru
      _
    // Predicated region
    $region30: #{tpu_custom_call.1} parent=1 // pred_check
      _
    $region31: #{tpu_custom_call.1} parent=1 // pred_check_branch
      %881 = sbr.rel (0) target = $region33
    $region32: #{tpu_custom_call.1} parent=1 // pred_region
      %s883 = ssub.s32 128, 128
      %884 = vsyncadd [#allocation11], %s883
      %s886 = sshll.u32 [#allocation10], 4
      %s887 = int_to_ptr.vmem [resolvable:$true] %s886
      %889 = dma.vmem_to_hbm [thread:$0]  %s887, 128, %s3, [#allocation11]
    $region33: #{tpu_custom_call.1} parent=1 // pred_fallthru
      _
    // Predicated region
    $region34: #{tpu_custom_call.1} parent=1 // pred_check
      _
    $region35: #{tpu_custom_call.1} parent=1 // pred_check_branch
      %891 = sbr.rel (0) target = $region37
    $region36: #{tpu_custom_call.1} parent=1 // pred_region
      %s893 = ssub.s32 128, 128
      %894 = vsyncadd [#allocation11], %s893
      %s896 = sshll.u32 [#allocation12], 4
      %s897 = int_to_ptr.vmem [resolvable:$true] %s896
      %899 = dma.vmem_to_hbm [thread:$0]  %s897, 128, %s4, [#allocation11]
    $region37: #{tpu_custom_call.1} parent=1 // pred_fallthru
      _
    // Predicated region
    $region38: #{tpu_custom_call.1} parent=1 // pred_check
      _
    $region39: #{tpu_custom_call.1} parent=1 // pred_check_branch
      %901 = sbr.rel (0) target = $region41
    $region40: #{tpu_custom_call.1} parent=1 // pred_region
      %902 = dma.done [#allocation6], 1024
    $region41: #{tpu_custom_call.1} parent=1 // pred_fallthru
      _
    // Predicated region
    $region42: #{tpu_custom_call.1} parent=1 // pred_check
      _
    $region43: #{tpu_custom_call.1} parent=1 // pred_check_branch
      %904 = sbr.rel (0) target = $region45
    $region44: #{tpu_custom_call.1} parent=1 // pred_region
      %905 = dma.done [#allocation11], 128
    $region45: #{tpu_custom_call.1} parent=1 // pred_fallthru
      _
    // Predicated region
    $region46: #{tpu_custom_call.1} parent=1 // pred_check
      _
    $region47: #{tpu_custom_call.1} parent=1 // pred_check_branch
      %907 = sbr.rel (0) target = $region49
    $region48: #{tpu_custom_call.1} parent=1 // pred_region
      %908 = dma.done [#allocation11], 128
    $region49: #{tpu_custom_call.1} parent=1 // pred_fallthru
      _
    %909 = vsyncpa [#allocation5], 1
    %910 = vsyncpa [#allocation8], 1
    %911 = vsyncpa [#allocation6], 1
    %912 = vsyncpa [#allocation11], 1

</llo_original>
